<compile_context>
chip_gen: v6e
topology: v6e:2x2x1
jax: 0.10.0
libtpu: 0.0.40
codegen_flags: <defaults>
</compile_context>

<pallas_src>
import functools

import jax
import jax.numpy as jnp
from jax.experimental import pallas as pl
from jax.experimental.pallas import tpu as pltpu

VOICES = 5
NUM_HIDDEN_AGGREG = 130
NUM_HIDDEN_VOICEGEN = 100
NUM_OUTPUT = 12
NUM_IN_LSTM = NUM_HIDDEN_AGGREG + 2 * NUM_OUTPUT  # 154

GATE_PAD = 128                      # each LSTM gate padded to a full 128-lane block
K2 = 2 * NUM_OUTPUT                 # 24
MAX_TILE_ROWS = 512                 # batch-tile cap (VMEM has >10x headroom here)
_SIGN_FIX = 0x7FFFFFFF              # order-preserving float32 -> int32 mapping


def _polyphony_kernel(zero_hidden, eup_dtype, *refs):
    if zero_hidden:
        (x_ref, w_ih_x_ref, w_sb_ref, b_ref, w_lin_ref, b_lin_ref,
         gumbel_ref, out_ref) = refs
        w_hh_ref = h0_ref = c0_ref = None
    else:
        (x_ref, w_ih_x_ref, w_sb_ref, w_hh_ref, b_ref, w_lin_ref, b_lin_ref,
         h0_ref, c0_ref, gumbel_ref, out_ref) = refs

    TB = x_ref.shape[0]
    GP = GATE_PAD

    # ---- hoisted, voice-invariant work -------------------------------------
    w_sb = w_sb_ref[...]                 # (24, NG*128) bf16
    w_lin = w_lin_ref[...]               # (128, 24)    f32
    b_lin = b_lin_ref[...]               # (1, 24)      f32

    # x-contribution of the input matmul (+ bias), shared by all 5 voices.
    gx = (
        jnp.dot(x_ref[...], w_ih_x_ref[...], preferred_element_type=jnp.float32)
        + b_ref[...]
    )  # (TB, NG*128)

    if not zero_hidden:
        # All five h0[v] @ W_hh matmuls as one batched MXU pass.
        h0_2d = h0_ref[...].reshape(VOICES * TB, GP).astype(jnp.bfloat16)
        hh_all = jnp.dot(h0_2d, w_hh_ref[...],
                         preferred_element_type=jnp.float32)  # (5TB, 512)

    lane = jax.lax.broadcasted_iota(jnp.int32, (TB, K2), 1)
    lane_swap = jnp.where(lane < NUM_OUTPUT, lane + NUM_OUTPUT, lane - NUM_OUTPUT)
    tiebreak = jnp.int32(K2 - 1) - lane          # low-5-bit tie-break, favors low lane

    sb = jnp.zeros((TB, K2), jnp.float32)        # [sampled | banned]
    sb_swap = jnp.zeros((TB, K2), jnp.float32)   # [banned | sampled]
    p_acc = jnp.zeros((TB, K2), jnp.float32)     # [sample_p | ban_p]
    neg_acc = jnp.ones((TB, K2), jnp.float32)

    # VOICES is tiny and static -> fully unrolled Python loop (serial dependency).
    for v in range(VOICES):
        gates = gx if zero_hidden else gx + hh_all[v * TB:(v + 1) * TB, :]
        if v > 0:
            # sampled/banned contribution of the input matmul (bf16 MXU; sb is {0,1})
            gates = gates + jnp.dot(sb.astype(jnp.bfloat16), w_sb,
                                    preferred_element_type=jnp.float32)

        if zero_hidden:
            # gate layout [i | o | g]; c_prev == 0 so the forget gate is dead.
            sig = jax.nn.sigmoid(gates[:, :2 * GP].astype(eup_dtype)).astype(jnp.float32)
            i_g = sig[:, 0 * GP:1 * GP]
            o_g = sig[:, 1 * GP:2 * GP]
            g_g = jnp.tanh(gates[:, 2 * GP:3 * GP].astype(eup_dtype)).astype(jnp.float32)
            c_new = i_g * g_g                    # (TB, 128); pad lanes stay 0
        else:
            # gate layout [i | f | o | g], each 128-lane aligned -> free slices
            sig = jax.nn.sigmoid(gates[:, :3 * GP].astype(eup_dtype)).astype(jnp.float32)
            i_g = sig[:, 0 * GP:1 * GP]
            f_g = sig[:, 1 * GP:2 * GP]
            o_g = sig[:, 2 * GP:3 * GP]
            g_g = jnp.tanh(gates[:, 3 * GP:4 * GP].astype(eup_dtype)).astype(jnp.float32)
            c_new = f_g * c0_ref[v] + i_g * g_g
        h_new = o_g * jnp.tanh(c_new.astype(eup_dtype)).astype(jnp.float32)

        logits = (
            jnp.dot(h_new, w_lin, preferred_element_type=jnp.float32) + b_lin
        )  # (TB, 24)

        # coeff * exp(logits); logits are tanh-bounded, no max-subtraction needed.
        e = jnp.exp(logits)
        if v == 0:
            w_unnorm = e                          # coeff == 1 for the first voice
            score = logits + gumbel_ref[v]
        else:
            coeff = (1.0 - sb) * (1.0 - sb_swap)  # == cat-based coeff of the reference
            w_unnorm = coeff * e
            score = jnp.where(coeff > 0.0, logits + gumbel_ref[v], -jnp.inf)

        out = w_unnorm * pl.reciprocal(
            jnp.sum(w_unnorm, axis=-1, keepdims=True), approx=True
        )  # normalized distribution over 24 slots

        # first-success accumulation for sample_p (lanes :12) and ban_p (lanes 12:)
        p_acc = p_acc + neg_acc * out
        neg_acc = neg_acc * (1.0 - out)

        # categorical draw (torch.multinomial equivalent) via Gumbel-max.
        # Single XLU reduction: pack (K2-1-lane) into the low 5 bits of an
        # order-preserving int32 encoding of score; the max's low bits give the
        # winning lane (deterministic lowest-lane tie break, ties measure-zero).
        bits = pltpu.bitcast(score, jnp.int32)
        key = jnp.where(bits < 0, bits ^ jnp.int32(_SIGN_FIX), bits)
        key = (key & jnp.int32(-32)) | tiebreak
        best = jnp.max(key, axis=-1, keepdims=True)
        first = jnp.int32(K2 - 1) - (best & jnp.int32(31))
        sb = sb + (lane == first).astype(jnp.float32)
        sb_swap = sb_swap + (lane_swap == first).astype(jnp.float32)

    # single lane-dense output slab: [sampled | banned | sample_p | ban_p]
    out_ref[...] = jnp.concatenate([sb, p_acc], axis=-1)


def _round_up(n, m):
    return ((n + m - 1) // m) * m


def _tpu_kind():
    try:
        return jax.devices()[0].device_kind.lower()
    except Exception:
        return ""


def _num_parallel_tiles():
    kind = _tpu_kind()
    # v7x (2 TensorCores/chip) and v3/v4 megacore parts want 2 parallel tiles;
    # single-TC chips (v5e, v6e) want one big tile (minimum per-step overhead).
    return 2 if any(t in kind for t in ("v7", "7x", "tpu7", "v4", "v3")) else 1


def _use_bf16_transcendentals():
    kind = _tpu_kind()
    # v6e / v7x have bf16-capable EUP/VPU; keep f32 on v5e and older.
    return any(t in kind for t in ("v6", "v7", "7x", "tpu7"))


def _batch_tiling(b, n_parallel):
    """Returns (tile_rows, padded_batch, num_tiles); tile_rows is a multiple of 16."""
    b16 = _round_up(max(b, 1), 16)
    n_tiles = max(n_parallel, -(-b16 // MAX_TILE_ROWS))
    tb = _round_up(-(-b16 // n_tiles), 16)
    return tb, tb * n_tiles, n_tiles


def _prep_params(params, zero_hidden):
    """Gate-align / reorder the LSTM + Linear parameters for the kernel layout."""
    H = NUM_HIDDEN_VOICEGEN
    # PyTorch gate order is [i, f, g, o]; kernel layout is 128-lane-aligned gate
    # blocks in order [i, f, o, g] (full) or [i, o, g] (zero-hidden: f unused).
    gate_order = (0, 3, 2) if zero_hidden else (0, 1, 3, 2)

    w_ih = params["w_ih"]                    # (400, 154)
    w_hh = params["w_hh"]                    # (400, 100)
    b = params["b_ih"] + params["b_hh"]      # (400,)
    w_lin = params["w_lin"]                  # (24, 100)
    b_lin = params["b_lin"]                  # (24,)

    def gate_cols(w_t):                      # (in, 400) -> (in, NG*128)
        blocks = []
        for g in gate_order:
            blk = w_t[:, g * H:(g + 1) * H]
            blocks.append(jnp.pad(blk, ((0, 0), (0, GATE_PAD - H))))
        return jnp.concatenate(blocks, axis=1)

    w_ih_t = gate_cols(w_ih.T)                                # (154, NG*128)
    prep = dict(
        w_ih_x=w_ih_t[:NUM_HIDDEN_AGGREG].astype(jnp.bfloat16),   # (130, NG*128)
        w_ih_sb=w_ih_t[NUM_HIDDEN_AGGREG:].astype(jnp.bfloat16),  # (24, NG*128)
        b=gate_cols(b[None, :]).astype(jnp.float32),               # (1, NG*128)
        w_lin=jnp.pad(w_lin.T, ((0, GATE_PAD - H), (0, 0))).astype(jnp.float32),
        b_lin=b_lin[None, :].astype(jnp.float32),
    )
    if not zero_hidden:
        prep["w_hh"] = jnp.pad(gate_cols(w_hh.T),
                               ((0, GATE_PAD - H), (0, 0))).astype(jnp.bfloat16)
    return prep


def polyphony_sampler(x, params, gumbel, h0=None, c0=None):
    """x: (1, B, 130) like PyTorch (seq, batch, feat). Returns ((1,B,12), (1,B,12)).

    h0/c0: optional (VOICES, B, 100) per-voice hidden/cell; None means the
    module's init_hidden (all-zero) path and selects the specialized kernel.
    """
    assert x.shape[0] == 1 and x.shape[2] == NUM_HIDDEN_AGGREG
    B = x.shape[1]
    zero_hidden = (h0 is None) and (c0 is None)
    n_gates = 3 if zero_hidden else 4
    N = n_gates * GATE_PAD
    prep = _prep_params(params, zero_hidden)

    tb, b_pad, n_tiles = _batch_tiling(B, _num_parallel_tiles())
    pad_b = b_pad - B
    pad_h = GATE_PAD - NUM_HIDDEN_VOICEGEN

    x2d = jnp.pad(x[0].astype(jnp.bfloat16), ((0, pad_b), (0, 0)))   # (B_pad, 130) bf16
    gmb = jnp.pad(gumbel.astype(jnp.float32), ((0, 0), (0, pad_b), (0, 0)))

    eup_dtype = jnp.bfloat16 if _use_bf16_transcendentals() else jnp.float32
    kernel = functools.partial(_polyphony_kernel, zero_hidden, eup_dtype)

    in_specs = [
        pl.BlockSpec((tb, NUM_HIDDEN_AGGREG), lambda i: (i, 0)),     # x (bf16)
        pl.BlockSpec((NUM_HIDDEN_AGGREG, N), lambda i: (0, 0)),      # w_ih_x
        pl.BlockSpec((K2, N), lambda i: (0, 0)),                     # w_ih_sb
    ]
    args = [x2d, prep["w_ih_x"], prep["w_ih_sb"]]
    if not zero_hidden:
        in_specs.append(pl.BlockSpec((GATE_PAD, N), lambda i: (0, 0)))   # w_hh
        args.append(prep["w_hh"])
    in_specs += [
        pl.BlockSpec((1, N), lambda i: (0, 0)),                      # b
        pl.BlockSpec((GATE_PAD, K2), lambda i: (0, 0)),              # w_lin
        pl.BlockSpec((1, K2), lambda i: (0, 0)),                     # b_lin
    ]
    args += [prep["b"], prep["w_lin"], prep["b_lin"]]
    if not zero_hidden:
        h0p = jnp.pad(h0.astype(jnp.float32), ((0, 0), (0, pad_b), (0, pad_h)))
        c0p = jnp.pad(c0.astype(jnp.float32), ((0, 0), (0, pad_b), (0, pad_h)))
        in_specs += [pl.BlockSpec((VOICES, tb, GATE_PAD), lambda i: (0, i, 0))] * 2
        args += [h0p, c0p]
    in_specs.append(pl.BlockSpec((VOICES, tb, K2), lambda i: (0, i, 0)))  # gumbel
    args.append(gmb)

    out = pl.pallas_call(
        kernel,
        out_shape=jax.ShapeDtypeStruct((b_pad, 2 * K2), jnp.float32),
        grid=(n_tiles,),
        in_specs=in_specs,
        out_specs=pl.BlockSpec((tb, 2 * K2), lambda i: (i, 0)),
        compiler_params=pltpu.CompilerParams(
            dimension_semantics=("parallel",),
            vmem_limit_bytes=48 * 1024 * 1024,
        ),
    )(*args)

    sb = out[:B, :K2]          # [sampled | banned]
    p = out[:B, K2:]           # [sample_p | ban_p]
    sampled = sb[:, :NUM_OUTPUT]
    probs = p[:, :NUM_OUTPUT] * (1.0 - p[:, NUM_OUTPUT:])
    return sampled[None], probs[None]


def init_params(key):
    ks = jax.random.split(key, 6)
    H, K, IN = NUM_HIDDEN_VOICEGEN, NUM_OUTPUT, NUM_IN_LSTM
    s = 1.0 / jnp.sqrt(H)
    return {
        "w_ih": jax.random.uniform(ks[0], (4 * H, IN), jnp.float32, -s, s),
        "w_hh": jax.random.uniform(ks[1], (4 * H, H), jnp.float32, -s, s),
        "b_ih": jax.random.uniform(ks[2], (4 * H,), jnp.float32, -s, s),
        "b_hh": jax.random.uniform(ks[3], (4 * H,), jnp.float32, -s, s),
        "w_lin": jax.random.uniform(ks[4], (K * 2, H), jnp.float32, -s, s),
        "b_lin": jax.random.uniform(ks[5], (K * 2,), jnp.float32, -s, s),
    }


if __name__ == "__main__":
    key = jax.random.PRNGKey(0)
    k_param, k_x, k_u, k_h, k_c = jax.random.split(key, 5)

    B = 8  # small batch (module default was 140; shrunk for the demo)
    params = init_params(k_param)
    x = jax.random.normal(k_x, (1, B, NUM_HIDDEN_AGGREG), jnp.float32)

    # Gumbel noise for the categorical draws (one per voice per batch element).
    # TODO(synk): exact torch.multinomial RNG streams are irreproducible by
    # construction; the Gumbel-max draw is distribution-equivalent.
    u = jax.random.uniform(
        k_u, (VOICES, B, 2 * NUM_OUTPUT), jnp.float32, minval=1e-6, maxval=1.0 - 1e-6
    )
    gumbel = -jnp.log(-jnp.log(u))

    def check(sampled_notes, probs):
        assert sampled_notes.shape == (1, B, NUM_OUTPUT)
        assert probs.shape == (1, B, NUM_OUTPUT)
        assert bool(jnp.all(sampled_notes >= 0.0)) and bool(jnp.all(sampled_notes <= 1.0))
        assert bool(jnp.all(probs >= -1e-3)) and bool(jnp.all(probs <= 1.0 + 1e-3))
        # each voice samples exactly one slot of 24 -> at most VOICES notes on
        assert bool(jnp.all(jnp.sum(sampled_notes[0], axis=-1) <= VOICES))

    # 1) Module's init_hidden path (zero hidden/cell): specialized kernel that
    #    skips the h0 @ W_hh matmul and the forget gate entirely.
    sampled0, probs0 = polyphony_sampler(x, params, gumbel)
    jax.block_until_ready((sampled0, probs0))
    check(sampled0, probs0)

    # 2) General path with non-zero per-voice hidden state (full LSTM cell).
    h0 = 0.1 * jax.random.normal(k_h, (VOICES, B, NUM_HIDDEN_VOICEGEN), jnp.float32)
    c0 = 0.1 * jax.random.normal(k_c, (VOICES, B, NUM_HIDDEN_VOICEGEN), jnp.float32)
    sampled1, probs1 = polyphony_sampler(x, params, gumbel, h0=h0, c0=c0)
    jax.block_until_ready((sampled1, probs1))
    check(sampled1, probs1)

    print("KERNEL_OK")
</pallas_src>

<mosaic_0001>
module attributes {stable_mosaic.version = 11 : i64} {
  func.func @_polyphony_kernel(%arg0: i32, %arg1: memref<16x130xbf16, #tpu.memory_space<vmem>>, %arg2: memref<130x384xbf16, #tpu.memory_space<vmem>>, %arg3: memref<24x384xbf16, #tpu.memory_space<vmem>>, %arg4: memref<1x384xf32, #tpu.memory_space<vmem>>, %arg5: memref<128x24xf32, #tpu.memory_space<vmem>>, %arg6: memref<1x24xf32, #tpu.memory_space<vmem>>, %arg7: memref<5x16x24xf32, #tpu.memory_space<vmem>>, %arg8: memref<16x48xf32, #tpu.memory_space<vmem>>) attributes {dimension_semantics = [#tpu.dimension_semantics<parallel>], iteration_bounds = array<i64: 1>, scalar_prefetch = 0 : i64, scratch_operands = 0 : i64, tpu.core_type = #tpu.core_type<tc>, window_params = [{transform_indices = @transform_0, window_bounds = array<i64: 16, 130>}, {pipeline_mode = #tpu.pipeline_mode<synchronous>, transform_indices = @transform_1, window_bounds = array<i64: 130, 384>}, {pipeline_mode = #tpu.pipeline_mode<synchronous>, transform_indices = @transform_2, window_bounds = array<i64: 24, 384>}, {pipeline_mode = #tpu.pipeline_mode<synchronous>, transform_indices = @transform_3, window_bounds = array<i64: 1, 384>}, {pipeline_mode = #tpu.pipeline_mode<synchronous>, transform_indices = @transform_4, window_bounds = array<i64: 128, 24>}, {pipeline_mode = #tpu.pipeline_mode<synchronous>, transform_indices = @transform_5, window_bounds = array<i64: 1, 24>}, {transform_indices = @transform_6, window_bounds = array<i64: 5, 16, 24>}, {transform_indices = @transform_7, window_bounds = array<i64: 16, 48>}]} {
    %c0 = arith.constant 0 : index
    %c0_0 = arith.constant 0 : index
    %0 = vector.load %arg3[%c0, %c0_0] : memref<24x384xbf16, #tpu.memory_space<vmem>>, vector<24x384xbf16>
    %c0_1 = arith.constant 0 : index
    %c0_2 = arith.constant 0 : index
    %1 = vector.load %arg5[%c0_1, %c0_2] : memref<128x24xf32, #tpu.memory_space<vmem>>, vector<128x24xf32>
    %c0_3 = arith.constant 0 : index
    %c0_4 = arith.constant 0 : index
    %2 = vector.load %arg6[%c0_3, %c0_4] : memref<1x24xf32, #tpu.memory_space<vmem>>, vector<1x24xf32>
    %c0_5 = arith.constant 0 : index
    %c0_6 = arith.constant 0 : index
    %3 = vector.load %arg1[%c0_5, %c0_6] : memref<16x130xbf16, #tpu.memory_space<vmem>>, vector<16x130xbf16>
    %c0_7 = arith.constant 0 : index
    %c0_8 = arith.constant 0 : index
    %4 = vector.load %arg2[%c0_7, %c0_8] : memref<130x384xbf16, #tpu.memory_space<vmem>>, vector<130x384xbf16>
    %cst = arith.constant dense<0.000000e+00> : vector<16x384xf32>
    %5 = tpu.matmul %3, %4, %cst {dimension_numbers = #tpu.dot_dimension_numbers<[1], [0], [0], [1], [0, 0, 1, 1], [], []>} : vector<16x130xbf16>, vector<130x384xbf16>, vector<16x384xf32> -> vector<16x384xf32>
    %c0_9 = arith.constant 0 : index
    %c0_10 = arith.constant 0 : index
    %6 = vector.load %arg4[%c0_9, %c0_10] : memref<1x384xf32, #tpu.memory_space<vmem>>, vector<1x384xf32>
    %7 = vector.broadcast %6 : vector<1x384xf32> to vector<16x384xf32>
    %8 = arith.addf %5, %7 : vector<16x384xf32>
    %9 = tpu.iota {dimensions = array<i32: 1>} : vector<16x24xi32>
    %c12_i32 = arith.constant 12 : i32
    %10 = vector.broadcast %c12_i32 : i32 to vector<16x24xi32>
    %11 = arith.cmpi slt, %9, %10 : vector<16x24xi32>
    %c12_i32_11 = arith.constant 12 : i32
    %12 = vector.broadcast %c12_i32_11 : i32 to vector<16x24xi32>
    %13 = arith.addi %9, %12 : vector<16x24xi32>
    %c12_i32_12 = arith.constant 12 : i32
    %14 = vector.broadcast %c12_i32_12 : i32 to vector<16x24xi32>
    %15 = arith.subi %9, %14 : vector<16x24xi32>
    %16 = arith.select %11, %13, %15 : vector<16x24xi1>, vector<16x24xi32>
    %c23_i32 = arith.constant 23 : i32
    %17 = vector.broadcast %c23_i32 : i32 to vector<16x24xi32>
    %18 = arith.subi %17, %9 : vector<16x24xi32>
    %cst_13 = arith.constant 0.000000e+00 : f32
    %19 = vector.broadcast %cst_13 : f32 to vector<16x24xf32>
    %cst_14 = arith.constant 0.000000e+00 : f32
    %20 = vector.broadcast %cst_14 : f32 to vector<16x24xf32>
    %cst_15 = arith.constant 0.000000e+00 : f32
    %21 = vector.broadcast %cst_15 : f32 to vector<16x24xf32>
    %cst_16 = arith.constant 1.000000e+00 : f32
    %22 = vector.broadcast %cst_16 : f32 to vector<16x24xf32>
    %23 = vector.extract_strided_slice %8 {offsets = [0, 0], sizes = [16, 256], strides = [1, 1]} : vector<16x384xf32> to vector<16x256xf32>
    %24 = arith.negf %23 : vector<16x256xf32>
    %25 = math.exp %24 : vector<16x256xf32>
    %cst_17 = arith.constant 1.000000e+00 : f32
    %26 = vector.broadcast %cst_17 : f32 to vector<16x256xf32>
    %27 = arith.addf %26, %25 : vector<16x256xf32>
    %28 = arith.divf %26, %27 : vector<16x256xf32>
    %29 = vector.extract_strided_slice %28 {offsets = [0, 0], sizes = [16, 128], strides = [1, 1]} : vector<16x256xf32> to vector<16x128xf32>
    %30 = vector.extract_strided_slice %28 {offsets = [0, 128], sizes = [16, 128], strides = [1, 1]} : vector<16x256xf32> to vector<16x128xf32>
    %31 = vector.extract_strided_slice %8 {offsets = [0, 256], sizes = [16, 128], strides = [1, 1]} : vector<16x384xf32> to vector<16x128xf32>
    %32 = math.tanh %31 : vector<16x128xf32>
    %33 = arith.mulf %29, %32 : vector<16x128xf32>
    %34 = math.tanh %33 : vector<16x128xf32>
    %35 = arith.mulf %30, %34 : vector<16x128xf32>
    %cst_18 = arith.constant dense<0.000000e+00> : vector<16x24xf32>
    %36 = tpu.matmul %35, %1, %cst_18 {dimension_numbers = #tpu.dot_dimension_numbers<[1], [0], [0], [1], [0, 0, 1, 1], [], []>} : vector<16x128xf32>, vector<128x24xf32>, vector<16x24xf32> -> vector<16x24xf32>
    %37 = vector.broadcast %2 : vector<1x24xf32> to vector<16x24xf32>
    %38 = arith.addf %36, %37 : vector<16x24xf32>
    %39 = math.exp %38 : vector<16x24xf32>
    %c0_19 = arith.constant 0 : index
    %c0_20 = arith.constant 0 : index
    %c0_21 = arith.constant 0 : index
    %40 = vector.load %arg7[%c0_19, %c0_20, %c0_21] : memref<5x16x24xf32, #tpu.memory_space<vmem>>, vector<1x16x24xf32>
    %41 = vector.shape_cast %40 : vector<1x16x24xf32> to vector<16x24xf32>
    %42 = arith.addf %38, %41 : vector<16x24xf32>
    %cst_22 = arith.constant dense<0.000000e+00> : vector<16xf32>
    %43 = vector.multi_reduction <add>, %39, %cst_22 [1] : vector<16x24xf32> to vector<16xf32>
    %44 = vector.shape_cast %43 : vector<16xf32> to vector<16x1xf32>
    %45 = tpu.reciprocal %44 {approx = true} : vector<16x1xf32> -> vector<16x1xf32>
    %46 = vector.broadcast %45 : vector<16x1xf32> to vector<16x24xf32>
    %47 = arith.mulf %39, %46 : vector<16x24xf32>
    %48 = arith.mulf %22, %47 : vector<16x24xf32>
    %49 = arith.addf %21, %48 : vector<16x24xf32>
    %cst_23 = arith.constant 1.000000e+00 : f32
    %50 = vector.broadcast %cst_23 : f32 to vector<16x24xf32>
    %51 = arith.subf %50, %47 : vector<16x24xf32>
    %52 = arith.mulf %22, %51 : vector<16x24xf32>
    %53 = tpu.bitcast %42 : vector<16x24xf32> -> vector<16x24xi32>
    %c0_i32 = arith.constant 0 : i32
    %54 = vector.broadcast %c0_i32 : i32 to vector<16x24xi32>
    %55 = arith.cmpi slt, %53, %54 : vector<16x24xi32>
    %c2147483647_i32 = arith.constant 2147483647 : i32
    %56 = vector.broadcast %c2147483647_i32 : i32 to vector<16x24xi32>
    %57 = arith.xori %53, %56 : vector<16x24xi32>
    %58 = arith.select %55, %57, %53 : vector<16x24xi1>, vector<16x24xi32>
    %c-32_i32 = arith.constant -32 : i32
    %59 = vector.broadcast %c-32_i32 : i32 to vector<16x24xi32>
    %60 = arith.andi %58, %59 : vector<16x24xi32>
    %61 = arith.ori %60, %18 : vector<16x24xi32>
    %cst_24 = arith.constant dense<-2147483648> : vector<16xi32>
    %62 = vector.multi_reduction <maxsi>, %61, %cst_24 [1] : vector<16x24xi32> to vector<16xi32>
    %63 = vector.shape_cast %62 : vector<16xi32> to vector<16x1xi32>
    %c31_i32 = arith.constant 31 : i32
    %64 = vector.broadcast %c31_i32 : i32 to vector<16x1xi32>
    %65 = arith.andi %63, %64 : vector<16x1xi32>
    %c23_i32_25 = arith.constant 23 : i32
    %66 = vector.broadcast %c23_i32_25 : i32 to vector<16x1xi32>
    %67 = arith.subi %66, %65 : vector<16x1xi32>
    %68 = vector.broadcast %67 : vector<16x1xi32> to vector<16x24xi32>
    %69 = arith.cmpi eq, %9, %68 : vector<16x24xi32>
    %70 = arith.extui %69 : vector<16x24xi1> to vector<16x24xi32>
    %71 = arith.sitofp %70 : vector<16x24xi32> to vector<16x24xf32>
    %72 = arith.addf %19, %71 : vector<16x24xf32>
    %73 = vector.broadcast %67 : vector<16x1xi32> to vector<16x24xi32>
    %74 = arith.cmpi eq, %16, %73 : vector<16x24xi32>
    %75 = arith.extui %74 : vector<16x24xi1> to vector<16x24xi32>
    %76 = arith.sitofp %75 : vector<16x24xi32> to vector<16x24xf32>
    %77 = arith.addf %20, %76 : vector<16x24xf32>
    %78 = arith.truncf %72 : vector<16x24xf32> to vector<16x24xbf16>
    %cst_26 = arith.constant dense<0.000000e+00> : vector<16x384xf32>
    %79 = tpu.matmul %78, %0, %cst_26 {dimension_numbers = #tpu.dot_dimension_numbers<[1], [0], [0], [1], [0, 0, 1, 1], [], []>} : vector<16x24xbf16>, vector<24x384xbf16>, vector<16x384xf32> -> vector<16x384xf32>
    %80 = arith.addf %8, %79 : vector<16x384xf32>
    %81 = vector.extract_strided_slice %80 {offsets = [0, 0], sizes = [16, 256], strides = [1, 1]} : vector<16x384xf32> to vector<16x256xf32>
    %82 = arith.negf %81 : vector<16x256xf32>
    %83 = math.exp %82 : vector<16x256xf32>
    %cst_27 = arith.constant 1.000000e+00 : f32
    %84 = vector.broadcast %cst_27 : f32 to vector<16x256xf32>
    %85 = arith.addf %84, %83 : vector<16x256xf32>
    %86 = arith.divf %84, %85 : vector<16x256xf32>
    %87 = vector.extract_strided_slice %86 {offsets = [0, 0], sizes = [16, 128], strides = [1, 1]} : vector<16x256xf32> to vector<16x128xf32>
    %88 = vector.extract_strided_slice %86 {offsets = [0, 128], sizes = [16, 128], strides = [1, 1]} : vector<16x256xf32> to vector<16x128xf32>
    %89 = vector.extract_strided_slice %80 {offsets = [0, 256], sizes = [16, 128], strides = [1, 1]} : vector<16x384xf32> to vector<16x128xf32>
    %90 = math.tanh %89 : vector<16x128xf32>
    %91 = arith.mulf %87, %90 : vector<16x128xf32>
    %92 = math.tanh %91 : vector<16x128xf32>
    %93 = arith.mulf %88, %92 : vector<16x128xf32>
    %cst_28 = arith.constant dense<0.000000e+00> : vector<16x24xf32>
    %94 = tpu.matmul %93, %1, %cst_28 {dimension_numbers = #tpu.dot_dimension_numbers<[1], [0], [0], [1], [0, 0, 1, 1], [], []>} : vector<16x128xf32>, vector<128x24xf32>, vector<16x24xf32> -> vector<16x24xf32>
    %95 = vector.broadcast %2 : vector<1x24xf32> to vector<16x24xf32>
    %96 = arith.addf %94, %95 : vector<16x24xf32>
    %97 = math.exp %96 : vector<16x24xf32>
    %cst_29 = arith.constant 1.000000e+00 : f32
    %98 = vector.broadcast %cst_29 : f32 to vector<16x24xf32>
    %99 = arith.subf %98, %72 : vector<16x24xf32>
    %cst_30 = arith.constant 1.000000e+00 : f32
    %100 = vector.broadcast %cst_30 : f32 to vector<16x24xf32>
    %101 = arith.subf %100, %77 : vector<16x24xf32>
    %102 = arith.mulf %99, %101 : vector<16x24xf32>
    %103 = arith.mulf %102, %97 : vector<16x24xf32>
    %cst_31 = arith.constant 0.000000e+00 : f32
    %104 = vector.broadcast %cst_31 : f32 to vector<16x24xf32>
    %105 = arith.cmpf ogt, %102, %104 : vector<16x24xf32>
    %c1 = arith.constant 1 : index
    %c0_32 = arith.constant 0 : index
    %c0_33 = arith.constant 0 : index
    %106 = vector.load %arg7[%c1, %c0_32, %c0_33] : memref<5x16x24xf32, #tpu.memory_space<vmem>>, vector<1x16x24xf32>
    %107 = vector.shape_cast %106 : vector<1x16x24xf32> to vector<16x24xf32>
    %108 = arith.addf %96, %107 : vector<16x24xf32>
    %cst_34 = arith.constant 0xFF800000 : f32
    %109 = vector.broadcast %cst_34 : f32 to vector<16x24xf32>
    %110 = arith.select %105, %108, %109 : vector<16x24xi1>, vector<16x24xf32>
    %cst_35 = arith.constant dense<0.000000e+00> : vector<16xf32>
    %111 = vector.multi_reduction <add>, %103, %cst_35 [1] : vector<16x24xf32> to vector<16xf32>
    %112 = vector.shape_cast %111 : vector<16xf32> to vector<16x1xf32>
    %113 = tpu.reciprocal %112 {approx = true} : vector<16x1xf32> -> vector<16x1xf32>
    %114 = vector.broadcast %113 : vector<16x1xf32> to vector<16x24xf32>
    %115 = arith.mulf %103, %114 : vector<16x24xf32>
    %116 = arith.mulf %52, %115 : vector<16x24xf32>
    %117 = arith.addf %49, %116 : vector<16x24xf32>
    %cst_36 = arith.constant 1.000000e+00 : f32
    %118 = vector.broadcast %cst_36 : f32 to vector<16x24xf32>
    %119 = arith.subf %118, %115 : vector<16x24xf32>
    %120 = arith.mulf %52, %119 : vector<16x24xf32>
    %121 = tpu.bitcast %110 : vector<16x24xf32> -> vector<16x24xi32>
    %c0_i32_37 = arith.constant 0 : i32
    %122 = vector.broadcast %c0_i32_37 : i32 to vector<16x24xi32>
    %123 = arith.cmpi slt, %121, %122 : vector<16x24xi32>
    %c2147483647_i32_38 = arith.constant 2147483647 : i32
    %124 = vector.broadcast %c2147483647_i32_38 : i32 to vector<16x24xi32>
    %125 = arith.xori %121, %124 : vector<16x24xi32>
    %126 = arith.select %123, %125, %121 : vector<16x24xi1>, vector<16x24xi32>
    %c-32_i32_39 = arith.constant -32 : i32
    %127 = vector.broadcast %c-32_i32_39 : i32 to vector<16x24xi32>
    %128 = arith.andi %126, %127 : vector<16x24xi32>
    %129 = arith.ori %128, %18 : vector<16x24xi32>
    %cst_40 = arith.constant dense<-2147483648> : vector<16xi32>
    %130 = vector.multi_reduction <maxsi>, %129, %cst_40 [1] : vector<16x24xi32> to vector<16xi32>
    %131 = vector.shape_cast %130 : vector<16xi32> to vector<16x1xi32>
    %c31_i32_41 = arith.constant 31 : i32
    %132 = vector.broadcast %c31_i32_41 : i32 to vector<16x1xi32>
    %133 = arith.andi %131, %132 : vector<16x1xi32>
    %c23_i32_42 = arith.constant 23 : i32
    %134 = vector.broadcast %c23_i32_42 : i32 to vector<16x1xi32>
    %135 = arith.subi %134, %133 : vector<16x1xi32>
    %136 = vector.broadcast %135 : vector<16x1xi32> to vector<16x24xi32>
    %137 = arith.cmpi eq, %9, %136 : vector<16x24xi32>
    %138 = arith.extui %137 : vector<16x24xi1> to vector<16x24xi32>
    %139 = arith.sitofp %138 : vector<16x24xi32> to vector<16x24xf32>
    %140 = arith.addf %72, %139 : vector<16x24xf32>
    %141 = vector.broadcast %135 : vector<16x1xi32> to vector<16x24xi32>
    %142 = arith.cmpi eq, %16, %141 : vector<16x24xi32>
    %143 = arith.extui %142 : vector<16x24xi1> to vector<16x24xi32>
    %144 = arith.sitofp %143 : vector<16x24xi32> to vector<16x24xf32>
    %145 = arith.addf %77, %144 : vector<16x24xf32>
    %146 = arith.truncf %140 : vector<16x24xf32> to vector<16x24xbf16>
    %cst_43 = arith.constant dense<0.000000e+00> : vector<16x384xf32>
    %147 = tpu.matmul %146, %0, %cst_43 {dimension_numbers = #tpu.dot_dimension_numbers<[1], [0], [0], [1], [0, 0, 1, 1], [], []>} : vector<16x24xbf16>, vector<24x384xbf16>, vector<16x384xf32> -> vector<16x384xf32>
    %148 = arith.addf %8, %147 : vector<16x384xf32>
    %149 = vector.extract_strided_slice %148 {offsets = [0, 0], sizes = [16, 256], strides = [1, 1]} : vector<16x384xf32> to vector<16x256xf32>
    %150 = arith.negf %149 : vector<16x256xf32>
    %151 = math.exp %150 : vector<16x256xf32>
    %cst_44 = arith.constant 1.000000e+00 : f32
    %152 = vector.broadcast %cst_44 : f32 to vector<16x256xf32>
    %153 = arith.addf %152, %151 : vector<16x256xf32>
    %154 = arith.divf %152, %153 : vector<16x256xf32>
    %155 = vector.extract_strided_slice %154 {offsets = [0, 0], sizes = [16, 128], strides = [1, 1]} : vector<16x256xf32> to vector<16x128xf32>
    %156 = vector.extract_strided_slice %154 {offsets = [0, 128], sizes = [16, 128], strides = [1, 1]} : vector<16x256xf32> to vector<16x128xf32>
    %157 = vector.extract_strided_slice %148 {offsets = [0, 256], sizes = [16, 128], strides = [1, 1]} : vector<16x384xf32> to vector<16x128xf32>
    %158 = math.tanh %157 : vector<16x128xf32>
    %159 = arith.mulf %155, %158 : vector<16x128xf32>
    %160 = math.tanh %159 : vector<16x128xf32>
    %161 = arith.mulf %156, %160 : vector<16x128xf32>
    %cst_45 = arith.constant dense<0.000000e+00> : vector<16x24xf32>
    %162 = tpu.matmul %161, %1, %cst_45 {dimension_numbers = #tpu.dot_dimension_numbers<[1], [0], [0], [1], [0, 0, 1, 1], [], []>} : vector<16x128xf32>, vector<128x24xf32>, vector<16x24xf32> -> vector<16x24xf32>
    %163 = vector.broadcast %2 : vector<1x24xf32> to vector<16x24xf32>
    %164 = arith.addf %162, %163 : vector<16x24xf32>
    %165 = math.exp %164 : vector<16x24xf32>
    %cst_46 = arith.constant 1.000000e+00 : f32
    %166 = vector.broadcast %cst_46 : f32 to vector<16x24xf32>
    %167 = arith.subf %166, %140 : vector<16x24xf32>
    %cst_47 = arith.constant 1.000000e+00 : f32
    %168 = vector.broadcast %cst_47 : f32 to vector<16x24xf32>
    %169 = arith.subf %168, %145 : vector<16x24xf32>
    %170 = arith.mulf %167, %169 : vector<16x24xf32>
    %171 = arith.mulf %170, %165 : vector<16x24xf32>
    %cst_48 = arith.constant 0.000000e+00 : f32
    %172 = vector.broadcast %cst_48 : f32 to vector<16x24xf32>
    %173 = arith.cmpf ogt, %170, %172 : vector<16x24xf32>
    %c2 = arith.constant 2 : index
    %c0_49 = arith.constant 0 : index
    %c0_50 = arith.constant 0 : index
    %174 = vector.load %arg7[%c2, %c0_49, %c0_50] : memref<5x16x24xf32, #tpu.memory_space<vmem>>, vector<1x16x24xf32>
    %175 = vector.shape_cast %174 : vector<1x16x24xf32> to vector<16x24xf32>
    %176 = arith.addf %164, %175 : vector<16x24xf32>
    %cst_51 = arith.constant 0xFF800000 : f32
    %177 = vector.broadcast %cst_51 : f32 to vector<16x24xf32>
    %178 = arith.select %173, %176, %177 : vector<16x24xi1>, vector<16x24xf32>
    %cst_52 = arith.constant dense<0.000000e+00> : vector<16xf32>
    %179 = vector.multi_reduction <add>, %171, %cst_52 [1] : vector<16x24xf32> to vector<16xf32>
    %180 = vector.shape_cast %179 : vector<16xf32> to vector<16x1xf32>
    %181 = tpu.reciprocal %180 {approx = true} : vector<16x1xf32> -> vector<16x1xf32>
    %182 = vector.broadcast %181 : vector<16x1xf32> to vector<16x24xf32>
    %183 = arith.mulf %171, %182 : vector<16x24xf32>
    %184 = arith.mulf %120, %183 : vector<16x24xf32>
    %185 = arith.addf %117, %184 : vector<16x24xf32>
    %cst_53 = arith.constant 1.000000e+00 : f32
    %186 = vector.broadcast %cst_53 : f32 to vector<16x24xf32>
    %187 = arith.subf %186, %183 : vector<16x24xf32>
    %188 = arith.mulf %120, %187 : vector<16x24xf32>
    %189 = tpu.bitcast %178 : vector<16x24xf32> -> vector<16x24xi32>
    %c0_i32_54 = arith.constant 0 : i32
    %190 = vector.broadcast %c0_i32_54 : i32 to vector<16x24xi32>
    %191 = arith.cmpi slt, %189, %190 : vector<16x24xi32>
    %c2147483647_i32_55 = arith.constant 2147483647 : i32
    %192 = vector.broadcast %c2147483647_i32_55 : i32 to vector<16x24xi32>
    %193 = arith.xori %189, %192 : vector<16x24xi32>
    %194 = arith.select %191, %193, %189 : vector<16x24xi1>, vector<16x24xi32>
    %c-32_i32_56 = arith.constant -32 : i32
    %195 = vector.broadcast %c-32_i32_56 : i32 to vector<16x24xi32>
    %196 = arith.andi %194, %195 : vector<16x24xi32>
    %197 = arith.ori %196, %18 : vector<16x24xi32>
    %cst_57 = arith.constant dense<-2147483648> : vector<16xi32>
    %198 = vector.multi_reduction <maxsi>, %197, %cst_57 [1] : vector<16x24xi32> to vector<16xi32>
    %199 = vector.shape_cast %198 : vector<16xi32> to vector<16x1xi32>
    %c31_i32_58 = arith.constant 31 : i32
    %200 = vector.broadcast %c31_i32_58 : i32 to vector<16x1xi32>
    %201 = arith.andi %199, %200 : vector<16x1xi32>
    %c23_i32_59 = arith.constant 23 : i32
    %202 = vector.broadcast %c23_i32_59 : i32 to vector<16x1xi32>
    %203 = arith.subi %202, %201 : vector<16x1xi32>
    %204 = vector.broadcast %203 : vector<16x1xi32> to vector<16x24xi32>
    %205 = arith.cmpi eq, %9, %204 : vector<16x24xi32>
    %206 = arith.extui %205 : vector<16x24xi1> to vector<16x24xi32>
    %207 = arith.sitofp %206 : vector<16x24xi32> to vector<16x24xf32>
    %208 = arith.addf %140, %207 : vector<16x24xf32>
    %209 = vector.broadcast %203 : vector<16x1xi32> to vector<16x24xi32>
    %210 = arith.cmpi eq, %16, %209 : vector<16x24xi32>
    %211 = arith.extui %210 : vector<16x24xi1> to vector<16x24xi32>
    %212 = arith.sitofp %211 : vector<16x24xi32> to vector<16x24xf32>
    %213 = arith.addf %145, %212 : vector<16x24xf32>
    %214 = arith.truncf %208 : vector<16x24xf32> to vector<16x24xbf16>
    %cst_60 = arith.constant dense<0.000000e+00> : vector<16x384xf32>
    %215 = tpu.matmul %214, %0, %cst_60 {dimension_numbers = #tpu.dot_dimension_numbers<[1], [0], [0], [1], [0, 0, 1, 1], [], []>} : vector<16x24xbf16>, vector<24x384xbf16>, vector<16x384xf32> -> vector<16x384xf32>
    %216 = arith.addf %8, %215 : vector<16x384xf32>
    %217 = vector.extract_strided_slice %216 {offsets = [0, 0], sizes = [16, 256], strides = [1, 1]} : vector<16x384xf32> to vector<16x256xf32>
    %218 = arith.negf %217 : vector<16x256xf32>
    %219 = math.exp %218 : vector<16x256xf32>
    %cst_61 = arith.constant 1.000000e+00 : f32
    %220 = vector.broadcast %cst_61 : f32 to vector<16x256xf32>
    %221 = arith.addf %220, %219 : vector<16x256xf32>
    %222 = arith.divf %220, %221 : vector<16x256xf32>
    %223 = vector.extract_strided_slice %222 {offsets = [0, 0], sizes = [16, 128], strides = [1, 1]} : vector<16x256xf32> to vector<16x128xf32>
    %224 = vector.extract_strided_slice %222 {offsets = [0, 128], sizes = [16, 128], strides = [1, 1]} : vector<16x256xf32> to vector<16x128xf32>
    %225 = vector.extract_strided_slice %216 {offsets = [0, 256], sizes = [16, 128], strides = [1, 1]} : vector<16x384xf32> to vector<16x128xf32>
    %226 = math.tanh %225 : vector<16x128xf32>
    %227 = arith.mulf %223, %226 : vector<16x128xf32>
    %228 = math.tanh %227 : vector<16x128xf32>
    %229 = arith.mulf %224, %228 : vector<16x128xf32>
    %cst_62 = arith.constant dense<0.000000e+00> : vector<16x24xf32>
    %230 = tpu.matmul %229, %1, %cst_62 {dimension_numbers = #tpu.dot_dimension_numbers<[1], [0], [0], [1], [0, 0, 1, 1], [], []>} : vector<16x128xf32>, vector<128x24xf32>, vector<16x24xf32> -> vector<16x24xf32>
    %231 = vector.broadcast %2 : vector<1x24xf32> to vector<16x24xf32>
    %232 = arith.addf %230, %231 : vector<16x24xf32>
    %233 = math.exp %232 : vector<16x24xf32>
    %cst_63 = arith.constant 1.000000e+00 : f32
    %234 = vector.broadcast %cst_63 : f32 to vector<16x24xf32>
    %235 = arith.subf %234, %208 : vector<16x24xf32>
    %cst_64 = arith.constant 1.000000e+00 : f32
    %236 = vector.broadcast %cst_64 : f32 to vector<16x24xf32>
    %237 = arith.subf %236, %213 : vector<16x24xf32>
    %238 = arith.mulf %235, %237 : vector<16x24xf32>
    %239 = arith.mulf %238, %233 : vector<16x24xf32>
    %cst_65 = arith.constant 0.000000e+00 : f32
    %240 = vector.broadcast %cst_65 : f32 to vector<16x24xf32>
    %241 = arith.cmpf ogt, %238, %240 : vector<16x24xf32>
    %c3 = arith.constant 3 : index
    %c0_66 = arith.constant 0 : index
    %c0_67 = arith.constant 0 : index
    %242 = vector.load %arg7[%c3, %c0_66, %c0_67] : memref<5x16x24xf32, #tpu.memory_space<vmem>>, vector<1x16x24xf32>
    %243 = vector.shape_cast %242 : vector<1x16x24xf32> to vector<16x24xf32>
    %244 = arith.addf %232, %243 : vector<16x24xf32>
    %cst_68 = arith.constant 0xFF800000 : f32
    %245 = vector.broadcast %cst_68 : f32 to vector<16x24xf32>
    %246 = arith.select %241, %244, %245 : vector<16x24xi1>, vector<16x24xf32>
    %cst_69 = arith.constant dense<0.000000e+00> : vector<16xf32>
    %247 = vector.multi_reduction <add>, %239, %cst_69 [1] : vector<16x24xf32> to vector<16xf32>
    %248 = vector.shape_cast %247 : vector<16xf32> to vector<16x1xf32>
    %249 = tpu.reciprocal %248 {approx = true} : vector<16x1xf32> -> vector<16x1xf32>
    %250 = vector.broadcast %249 : vector<16x1xf32> to vector<16x24xf32>
    %251 = arith.mulf %239, %250 : vector<16x24xf32>
    %252 = arith.mulf %188, %251 : vector<16x24xf32>
    %253 = arith.addf %185, %252 : vector<16x24xf32>
    %cst_70 = arith.constant 1.000000e+00 : f32
    %254 = vector.broadcast %cst_70 : f32 to vector<16x24xf32>
    %255 = arith.subf %254, %251 : vector<16x24xf32>
    %256 = arith.mulf %188, %255 : vector<16x24xf32>
    %257 = tpu.bitcast %246 : vector<16x24xf32> -> vector<16x24xi32>
    %c0_i32_71 = arith.constant 0 : i32
    %258 = vector.broadcast %c0_i32_71 : i32 to vector<16x24xi32>
    %259 = arith.cmpi slt, %257, %258 : vector<16x24xi32>
    %c2147483647_i32_72 = arith.constant 2147483647 : i32
    %260 = vector.broadcast %c2147483647_i32_72 : i32 to vector<16x24xi32>
    %261 = arith.xori %257, %260 : vector<16x24xi32>
    %262 = arith.select %259, %261, %257 : vector<16x24xi1>, vector<16x24xi32>
    %c-32_i32_73 = arith.constant -32 : i32
    %263 = vector.broadcast %c-32_i32_73 : i32 to vector<16x24xi32>
    %264 = arith.andi %262, %263 : vector<16x24xi32>
    %265 = arith.ori %264, %18 : vector<16x24xi32>
    %cst_74 = arith.constant dense<-2147483648> : vector<16xi32>
    %266 = vector.multi_reduction <maxsi>, %265, %cst_74 [1] : vector<16x24xi32> to vector<16xi32>
    %267 = vector.shape_cast %266 : vector<16xi32> to vector<16x1xi32>
    %c31_i32_75 = arith.constant 31 : i32
    %268 = vector.broadcast %c31_i32_75 : i32 to vector<16x1xi32>
    %269 = arith.andi %267, %268 : vector<16x1xi32>
    %c23_i32_76 = arith.constant 23 : i32
    %270 = vector.broadcast %c23_i32_76 : i32 to vector<16x1xi32>
    %271 = arith.subi %270, %269 : vector<16x1xi32>
    %272 = vector.broadcast %271 : vector<16x1xi32> to vector<16x24xi32>
    %273 = arith.cmpi eq, %9, %272 : vector<16x24xi32>
    %274 = arith.extui %273 : vector<16x24xi1> to vector<16x24xi32>
    %275 = arith.sitofp %274 : vector<16x24xi32> to vector<16x24xf32>
    %276 = arith.addf %208, %275 : vector<16x24xf32>
    %277 = vector.broadcast %271 : vector<16x1xi32> to vector<16x24xi32>
    %278 = arith.cmpi eq, %16, %277 : vector<16x24xi32>
    %279 = arith.extui %278 : vector<16x24xi1> to vector<16x24xi32>
    %280 = arith.sitofp %279 : vector<16x24xi32> to vector<16x24xf32>
    %281 = arith.addf %213, %280 : vector<16x24xf32>
    %282 = arith.truncf %276 : vector<16x24xf32> to vector<16x24xbf16>
    %cst_77 = arith.constant dense<0.000000e+00> : vector<16x384xf32>
    %283 = tpu.matmul %282, %0, %cst_77 {dimension_numbers = #tpu.dot_dimension_numbers<[1], [0], [0], [1], [0, 0, 1, 1], [], []>} : vector<16x24xbf16>, vector<24x384xbf16>, vector<16x384xf32> -> vector<16x384xf32>
    %284 = arith.addf %8, %283 : vector<16x384xf32>
    %285 = vector.extract_strided_slice %284 {offsets = [0, 0], sizes = [16, 256], strides = [1, 1]} : vector<16x384xf32> to vector<16x256xf32>
    %286 = arith.negf %285 : vector<16x256xf32>
    %287 = math.exp %286 : vector<16x256xf32>
    %cst_78 = arith.constant 1.000000e+00 : f32
    %288 = vector.broadcast %cst_78 : f32 to vector<16x256xf32>
    %289 = arith.addf %288, %287 : vector<16x256xf32>
    %290 = arith.divf %288, %289 : vector<16x256xf32>
    %291 = vector.extract_strided_slice %290 {offsets = [0, 0], sizes = [16, 128], strides = [1, 1]} : vector<16x256xf32> to vector<16x128xf32>
    %292 = vector.extract_strided_slice %290 {offsets = [0, 128], sizes = [16, 128], strides = [1, 1]} : vector<16x256xf32> to vector<16x128xf32>
    %293 = vector.extract_strided_slice %284 {offsets = [0, 256], sizes = [16, 128], strides = [1, 1]} : vector<16x384xf32> to vector<16x128xf32>
    %294 = math.tanh %293 : vector<16x128xf32>
    %295 = arith.mulf %291, %294 : vector<16x128xf32>
    %296 = math.tanh %295 : vector<16x128xf32>
    %297 = arith.mulf %292, %296 : vector<16x128xf32>
    %cst_79 = arith.constant dense<0.000000e+00> : vector<16x24xf32>
    %298 = tpu.matmul %297, %1, %cst_79 {dimension_numbers = #tpu.dot_dimension_numbers<[1], [0], [0], [1], [0, 0, 1, 1], [], []>} : vector<16x128xf32>, vector<128x24xf32>, vector<16x24xf32> -> vector<16x24xf32>
    %299 = vector.broadcast %2 : vector<1x24xf32> to vector<16x24xf32>
    %300 = arith.addf %298, %299 : vector<16x24xf32>
    %301 = math.exp %300 : vector<16x24xf32>
    %cst_80 = arith.constant 1.000000e+00 : f32
    %302 = vector.broadcast %cst_80 : f32 to vector<16x24xf32>
    %303 = arith.subf %302, %276 : vector<16x24xf32>
    %cst_81 = arith.constant 1.000000e+00 : f32
    %304 = vector.broadcast %cst_81 : f32 to vector<16x24xf32>
    %305 = arith.subf %304, %281 : vector<16x24xf32>
    %306 = arith.mulf %303, %305 : vector<16x24xf32>
    %307 = arith.mulf %306, %301 : vector<16x24xf32>
    %cst_82 = arith.constant 0.000000e+00 : f32
    %308 = vector.broadcast %cst_82 : f32 to vector<16x24xf32>
    %309 = arith.cmpf ogt, %306, %308 : vector<16x24xf32>
    %c4 = arith.constant 4 : index
    %c0_83 = arith.constant 0 : index
    %c0_84 = arith.constant 0 : index
    %310 = vector.load %arg7[%c4, %c0_83, %c0_84] : memref<5x16x24xf32, #tpu.memory_space<vmem>>, vector<1x16x24xf32>
    %311 = vector.shape_cast %310 : vector<1x16x24xf32> to vector<16x24xf32>
    %312 = arith.addf %300, %311 : vector<16x24xf32>
    %cst_85 = arith.constant 0xFF800000 : f32
    %313 = vector.broadcast %cst_85 : f32 to vector<16x24xf32>
    %314 = arith.select %309, %312, %313 : vector<16x24xi1>, vector<16x24xf32>
    %cst_86 = arith.constant dense<0.000000e+00> : vector<16xf32>
    %315 = vector.multi_reduction <add>, %307, %cst_86 [1] : vector<16x24xf32> to vector<16xf32>
    %316 = vector.shape_cast %315 : vector<16xf32> to vector<16x1xf32>
    %317 = tpu.reciprocal %316 {approx = true} : vector<16x1xf32> -> vector<16x1xf32>
    %318 = vector.broadcast %317 : vector<16x1xf32> to vector<16x24xf32>
    %319 = arith.mulf %307, %318 : vector<16x24xf32>
    %320 = arith.mulf %256, %319 : vector<16x24xf32>
    %321 = arith.addf %253, %320 : vector<16x24xf32>
    %322 = tpu.bitcast %314 : vector<16x24xf32> -> vector<16x24xi32>
    %c0_i32_87 = arith.constant 0 : i32
    %323 = vector.broadcast %c0_i32_87 : i32 to vector<16x24xi32>
    %324 = arith.cmpi slt, %322, %323 : vector<16x24xi32>
    %c2147483647_i32_88 = arith.constant 2147483647 : i32
    %325 = vector.broadcast %c2147483647_i32_88 : i32 to vector<16x24xi32>
    %326 = arith.xori %322, %325 : vector<16x24xi32>
    %327 = arith.select %324, %326, %322 : vector<16x24xi1>, vector<16x24xi32>
    %c-32_i32_89 = arith.constant -32 : i32
    %328 = vector.broadcast %c-32_i32_89 : i32 to vector<16x24xi32>
    %329 = arith.andi %327, %328 : vector<16x24xi32>
    %330 = arith.ori %329, %18 : vector<16x24xi32>
    %cst_90 = arith.constant dense<-2147483648> : vector<16xi32>
    %331 = vector.multi_reduction <maxsi>, %330, %cst_90 [1] : vector<16x24xi32> to vector<16xi32>
    %332 = vector.shape_cast %331 : vector<16xi32> to vector<16x1xi32>
    %c31_i32_91 = arith.constant 31 : i32
    %333 = vector.broadcast %c31_i32_91 : i32 to vector<16x1xi32>
    %334 = arith.andi %332, %333 : vector<16x1xi32>
    %c23_i32_92 = arith.constant 23 : i32
    %335 = vector.broadcast %c23_i32_92 : i32 to vector<16x1xi32>
    %336 = arith.subi %335, %334 : vector<16x1xi32>
    %337 = vector.broadcast %336 : vector<16x1xi32> to vector<16x24xi32>
    %338 = arith.cmpi eq, %9, %337 : vector<16x24xi32>
    %339 = arith.extui %338 : vector<16x24xi1> to vector<16x24xi32>
    %340 = arith.sitofp %339 : vector<16x24xi32> to vector<16x24xf32>
    %341 = arith.addf %276, %340 : vector<16x24xf32>
    %342 = tpu.concatenate %341, %321 in 1 : vector<16x24xf32>, vector<16x24xf32> -> vector<16x48xf32>
    %c0_93 = arith.constant 0 : index
    %c0_94 = arith.constant 0 : index
    %343 = vector.load %arg8[%c0_93, %c0_94] : memref<16x48xf32, #tpu.memory_space<vmem>>, vector<16x48xf32>
    tpu.vector_store %arg8[%c0_93, %c0_94], %342 {strides = array<i32>} : memref<16x48xf32, #tpu.memory_space<vmem>>, vector<16x48xf32>,
    return
  }
  func.func @transform_0(%arg0: i32) -> (i32, i32) {
    %c0_i32 = arith.constant 0 : i32
    %c0_i32_0 = arith.constant 0 : i32
    return %arg0, %c0_i32 : i32, i32
  }
  func.func @transform_1(%arg0: i32) -> (i32, i32) {
    %c0_i32 = arith.constant 0 : i32
    %c0_i32_0 = arith.constant 0 : i32
    %c0_i32_1 = arith.constant 0 : i32
    return %c0_i32, %c0_i32_0 : i32, i32
  }
  func.func @transform_2(%arg0: i32) -> (i32, i32) {
    %c0_i32 = arith.constant 0 : i32
    %c0_i32_0 = arith.constant 0 : i32
    %c0_i32_1 = arith.constant 0 : i32
    return %c0_i32, %c0_i32_0 : i32, i32
  }
  func.func @transform_3(%arg0: i32) -> (i32, i32) {
    %c0_i32 = arith.constant 0 : i32
    %c0_i32_0 = arith.constant 0 : i32
    %c0_i32_1 = arith.constant 0 : i32
    return %c0_i32, %c0_i32_0 : i32, i32
  }
  func.func @transform_4(%arg0: i32) -> (i32, i32) {
    %c0_i32 = arith.constant 0 : i32
    %c0_i32_0 = arith.constant 0 : i32
    %c0_i32_1 = arith.constant 0 : i32
    return %c0_i32, %c0_i32_0 : i32, i32
  }
  func.func @transform_5(%arg0: i32) -> (i32, i32) {
    %c0_i32 = arith.constant 0 : i32
    %c0_i32_0 = arith.constant 0 : i32
    %c0_i32_1 = arith.constant 0 : i32
    return %c0_i32, %c0_i32_0 : i32, i32
  }
  func.func @transform_6(%arg0: i32) -> (i32, i32, i32) {
    %c0_i32 = arith.constant 0 : i32
    %c0_i32_0 = arith.constant 0 : i32
    %c0_i32_1 = arith.constant 0 : i32
    return %c0_i32, %arg0, %c0_i32_0 : i32, i32, i32
  }
  func.func @transform_7(%arg0: i32) -> (i32, i32) {
    %c0_i32 = arith.constant 0 : i32
    %c0_i32_0 = arith.constant 0 : i32
    return %arg0, %c0_i32 : i32, i32
  }
}

</mosaic_0001>

<llo_original>
// kernel: tpu_custom_call.1
$region0: #{tpu_custom_call.1}
  #allocation0 [shape = 'u32[]', space=smem, size = 0x4, offset = 0x4, fixed_abs, tag = 'smem constant byte address 0x4 - core index']
  #allocation1 [shape = 'u32[144,128]{1,0:T(1,128)}', space=vmem, size = 0x12000, scoped, tag = 'internal scratch']
  %s0 = inlined_call_operand.vmem [shape: bf16[16,130], index: 0, kind: input, shape index: {}]
  %s1 = inlined_call_operand.hbm [shape: bf16[130,384], index: 1, kind: input, shape index: {}]
  %s2 = inlined_call_operand.vmem [shape: bf16[24,384], index: 2, kind: input, shape index: {}]
  %s3 = inlined_call_operand.vmem [shape: f32[1,384], index: 3, kind: input, shape index: {}]
  %s4 = inlined_call_operand.vmem [shape: f32[128,24], index: 4, kind: input, shape index: {}]
  %s5 = inlined_call_operand.vmem [shape: f32[1,24], index: 5, kind: input, shape index: {}]
  %s6 = inlined_call_operand.vmem [shape: f32[5,16,24], index: 6, kind: input, shape index: {}]
  %s7 = inlined_call_operand.hbm [shape: f32[16,48], index: 7, kind: output, shape index: {}]
  %s8 = sld [smem:[#allocation0]]
  $region42: #{tpu_custom_call.1} parent=0
    _
  %s10 = ssub.s32 1, %s8
  %s11 = scalar_select 0, %s10, %s8
  $region1: #{tpu_custom_call.1} parent=0
    #allocation2 [shape = 'u8[104448]{0}', space=vmem, size = 0x19800, scoped, tag = 'input window, operand 1, single buffered']
    #allocation3 [shape = 's32[1]{0}', space=sflag, size = 0x4, scoped, tag = 'scoped memory for tpu_custom_call.1']
    #allocation4 [shape = 's32[1]{0}', space=sflag, size = 0x4, scoped, tag = 'scoped memory for tpu_custom_call.1']
    #allocation5 [shape = 'u8[8192]{0}', space=vmem, size = 0x2000, scoped, tag = 'output window, operand 0, single buffered']
    %12 = vsyncpa [#allocation3], 0
    %13 = vsyncpa [#allocation4], 0
    // Predicated region
    $region2: #{tpu_custom_call.1} parent=1 // pred_check
      _
    $region3: #{tpu_custom_call.1} parent=1 // pred_check_branch
      %15 = sbr.rel (0) target = $region5
    $region4: #{tpu_custom_call.1} parent=1 // pred_region
      _
    $region5: #{tpu_custom_call.1} parent=1 // pred_fallthru
      _
    // Predicated region
    $region6: #{tpu_custom_call.1} parent=1 // pred_check
      _
    $region7: #{tpu_custom_call.1} parent=1 // pred_check_branch
      %17 = sbr.rel (0) target = $region9
    $region8: #{tpu_custom_call.1} parent=1 // pred_region
      %s19 = ssub.s32 3264, 3264
      %20 = vsyncadd [#allocation3], %s19
      %s21 = sshll.u32 [#allocation2], 4
      %s22 = int_to_ptr.vmem [resolvable:$true] %s21
      %27 = dma.hbm_to_vmem [thread:$0]  %s1, 3264, %s22, [#allocation3], 192, 192, 12
    $region9: #{tpu_custom_call.1} parent=1 // pred_fallthru
      _
    // Predicated region
    $region10: #{tpu_custom_call.1} parent=1 // pred_check
      _
    $region11: #{tpu_custom_call.1} parent=1 // pred_check_branch
      %29 = sbr.rel (0) target = $region13
    $region12: #{tpu_custom_call.1} parent=1 // pred_region
      _
    $region13: #{tpu_custom_call.1} parent=1 // pred_fallthru
      _
    // Predicated region
    $region14: #{tpu_custom_call.1} parent=1 // pred_check
      _
    $region15: #{tpu_custom_call.1} parent=1 // pred_check_branch
      %31 = sbr.rel (0) target = $region17
    $region16: #{tpu_custom_call.1} parent=1 // pred_region
      _
    $region17: #{tpu_custom_call.1} parent=1 // pred_fallthru
      _
    // Predicated region
    $region18: #{tpu_custom_call.1} parent=1 // pred_check
      _
    $region19: #{tpu_custom_call.1} parent=1 // pred_check_branch
      %33 = sbr.rel (0) target = $region21
    $region20: #{tpu_custom_call.1} parent=1 // pred_region
      _
    $region21: #{tpu_custom_call.1} parent=1 // pred_fallthru
      _
    // Predicated region
    $region22: #{tpu_custom_call.1} parent=1 // pred_check
      _
    $region23: #{tpu_custom_call.1} parent=1 // pred_check_branch
      %35 = sbr.rel (0) target = $region25
    $region24: #{tpu_custom_call.1} parent=1 // pred_region
      _
    $region25: #{tpu_custom_call.1} parent=1 // pred_fallthru
      _
    // Predicated region
    $region26: #{tpu_custom_call.1} parent=1 // pred_check
      _
    $region27: #{tpu_custom_call.1} parent=1 // pred_check_branch
      %37 = sbr.rel (0) target = $region29
    $region28: #{tpu_custom_call.1} parent=1 // pred_region
      _
    $region29: #{tpu_custom_call.1} parent=1 // pred_fallthru
      _
    // Predicated region
    $region30: #{tpu_custom_call.1} parent=1 // pred_check
      _
    $region31: #{tpu_custom_call.1} parent=1 // pred_check_branch
      %39 = sbr.rel (0) target = $region33
    $region32: #{tpu_custom_call.1} parent=1 // pred_region
      %40 = dma.done [#allocation3], 3264
    $region33: #{tpu_custom_call.1} parent=1 // pred_fallthru
      _
    %v42 = vld [vmem:[%s2] sm:$0xff]
    %v43 = vld [vmem:[%s2 + $0x8] sm:$0xf]
    %v44 = vld [vmem:[%s2 + $0xc] sm:$0xff]
    %v45 = vld [vmem:[%s2 + $0x14] sm:$0xf]
    %v46 = vld [vmem:[%s2 + $0x18] sm:$0xff]
    %v47 = vld [vmem:[%s2 + $0x20] sm:$0xf]
    %v48 = vld [vmem:[%s4] sm:$0xff]
    %v49 = vld [vmem:[%s4 + $0x8] sm:$0xff]
    %v50 = vld [vmem:[%s4 + $0x10] sm:$0xff]
    %v51 = vld [vmem:[%s4 + $0x18] sm:$0xff]
    %v52 = vld [vmem:[%s4 + $0x20] sm:$0xff]
    %v53 = vld [vmem:[%s4 + $0x28] sm:$0xff]
    %v54 = vld [vmem:[%s4 + $0x30] sm:$0xff]
    %v55 = vld [vmem:[%s4 + $0x38] sm:$0xff]
    %v56 = vld [vmem:[%s4 + $0x40] sm:$0xff]
    %v57 = vld [vmem:[%s4 + $0x48] sm:$0xff]
    %v58 = vld [vmem:[%s4 + $0x50] sm:$0xff]
    %v59 = vld [vmem:[%s4 + $0x58] sm:$0xff]
    %v60 = vld [vmem:[%s4 + $0x60] sm:$0xff]
    %v61 = vld [vmem:[%s4 + $0x68] sm:$0xff]
    %v62 = vld [vmem:[%s4 + $0x70] sm:$0xff]
    %v63 = vld [vmem:[%s4 + $0x78] sm:$0xff]
    %v64 = vld [vmem:[%s5] sm:$0x1]
    %v65 = vld [vmem:[%s0] sm:$0xff]
    %v66 = vld [vmem:[%s0 + $0x8] sm:$0xff]
    %v67 = vld [vmem:[#allocation2] sm:$0xff]
    %v68 = vld [vmem:[#allocation2 + $0x8] sm:$0xf]
    %v69 = vld [vmem:[#allocation2 + $0xc] sm:$0xff]
    %v70 = vld [vmem:[#allocation2 + $0x14] sm:$0xf]
    %v71 = vld [vmem:[#allocation2 + $0x18] sm:$0xff]
    %v72 = vld [vmem:[#allocation2 + $0x20] sm:$0xf]
    %v73 = vld [vmem:[#allocation2 + $0x24] sm:$0xff]
    %v74 = vld [vmem:[#allocation2 + $0x2c] sm:$0xf]
    %v75 = vld [vmem:[#allocation2 + $0x30] sm:$0xff]
    %v76 = vld [vmem:[#allocation2 + $0x38] sm:$0xf]
    %v77 = vld [vmem:[#allocation2 + $0x3c] sm:$0xff]
    %v78 = vld [vmem:[#allocation2 + $0x44] sm:$0xf]
    %v79 = vld [vmem:[#allocation2 + $0x48] sm:$0xff]
    %v80 = vld [vmem:[#allocation2 + $0x50] sm:$0xf]
    %v81 = vld [vmem:[#allocation2 + $0x54] sm:$0xff]
    %v82 = vld [vmem:[#allocation2 + $0x5c] sm:$0xf]
    %v83 = vld [vmem:[#allocation2 + $0x60] sm:$0xff]
    %v84 = vld [vmem:[#allocation2 + $0x68] sm:$0xf]
    %v85 = vld [vmem:[#allocation2 + $0x6c] sm:$0xff]
    %v86 = vld [vmem:[#allocation2 + $0x74] sm:$0xf]
    %v87 = vld [vmem:[#allocation2 + $0x78] sm:$0xff]
    %v88 = vld [vmem:[#allocation2 + $0x80] sm:$0xf]
    %v89 = vld [vmem:[#allocation2 + $0x84] sm:$0xff]
    %v90 = vld [vmem:[#allocation2 + $0x8c] sm:$0xf]
    %v91 = vld [vmem:[#allocation2 + $0x90] sm:$0xff]
    %v92 = vld [vmem:[#allocation2 + $0x98] sm:$0xf]
    %v93 = vld [vmem:[#allocation2 + $0x9c] sm:$0xff]
    %v94 = vld [vmem:[#allocation2 + $0xa4] sm:$0xf]
    %v95 = vld [vmem:[#allocation2 + $0xa8] sm:$0xff]
    %v96 = vld [vmem:[#allocation2 + $0xb0] sm:$0xf]
    %v97 = vld [vmem:[#allocation2 + $0xb4] sm:$0xff]
    %v98 = vld [vmem:[#allocation2 + $0xbc] sm:$0xf]
    %v99 = vld [vmem:[#allocation2 + $0xc0] sm:$0x11]
    %v100 = vld [vmem:[#allocation2 + $0xc8] sm:$0x1]
    %v101 = vld [vmem:[%s3] sm:$0x7]
    %v103 = vlaneseq
    %v104 = vshrl.u32 %v103, 7
    %v105 = vsub.s32 0, %v104
    %v106 = vrot.slane %v101, %v105
    %v107 = vlaneseq
    %v108 = vshrl.u32 %v107, 7
    %v109 = vsub.s32 1, %v108
    %v110 = vrot.slane %v101, %v109
    %v111 = vlaneseq
    %v112 = vshrl.u32 %v111, 7
    %v113 = vsub.s32 2, %v112
    %v114 = vrot.slane %v101, %v113
    %v120 = vunpack.c.l.b16 %v65
    %v121 = vunpack.c.h.b16 %v65
    %v122 = vunpack.c.l.b16 %v66
    %v123 = vunpack.c.h.b16 %v66
    %v124 = vpack.c.b16 %v122, %v120
    %v125 = vpack.c.b16 %v123, %v121
    %v161 = vunpack.c.l.b16 %v67
    %v162 = vunpack.c.h.b16 %v67
    %v163 = vunpack.c.l.b16 %v68
    %v164 = vunpack.c.l.b16 %v69
    %v165 = vunpack.c.h.b16 %v69
    %v166 = vunpack.c.l.b16 %v70
    %v167 = vunpack.c.l.b16 %v71
    %v168 = vunpack.c.h.b16 %v71
    %v169 = vunpack.c.l.b16 %v72
    %v170 = vunpack.c.l.b16 %v73
    %v171 = vunpack.c.h.b16 %v73
    %v172 = vunpack.c.l.b16 %v74
    %v173 = vunpack.c.l.b16 %v75
    %v174 = vunpack.c.h.b16 %v75
    %v175 = vunpack.c.l.b16 %v76
    %v176 = vunpack.c.l.b16 %v77
    %v177 = vunpack.c.h.b16 %v77
    %v178 = vunpack.c.l.b16 %v78
    %v179 = vunpack.c.l.b16 %v79
    %v180 = vunpack.c.h.b16 %v79
    %v181 = vunpack.c.l.b16 %v80
    %v182 = vunpack.c.l.b16 %v81
    %v183 = vunpack.c.h.b16 %v81
    %v184 = vunpack.c.l.b16 %v82
    %v185 = vunpack.c.l.b16 %v83
    %v186 = vunpack.c.h.b16 %v83
    %v187 = vunpack.c.l.b16 %v84
    %v188 = vunpack.c.l.b16 %v85
    %v189 = vunpack.c.h.b16 %v85
    %v190 = vunpack.c.l.b16 %v86
    %v191 = vunpack.c.l.b16 %v87
    %v192 = vunpack.c.h.b16 %v87
    %v193 = vunpack.c.l.b16 %v88
    %v194 = vunpack.c.l.b16 %v89
    %v195 = vunpack.c.h.b16 %v89
    %v196 = vunpack.c.l.b16 %v90
    %v197 = vunpack.c.l.b16 %v91
    %v198 = vunpack.c.h.b16 %v91
    %v199 = vunpack.c.l.b16 %v92
    %v200 = vunpack.c.l.b16 %v93
    %v201 = vunpack.c.h.b16 %v93
    %v202 = vunpack.c.l.b16 %v94
    %v203 = vunpack.c.l.b16 %v95
    %v204 = vunpack.c.h.b16 %v95
    %v205 = vunpack.c.l.b16 %v96
    %v206 = vunpack.c.l.b16 %v97
    %v207 = vunpack.c.h.b16 %v97
    %v208 = vunpack.c.l.b16 %v98
    %v209 = vunpack.c.l.b16 %v99
    %v210 = vunpack.c.h.b16 %v99
    %v211 = vunpack.c.l.b16 %v100
    %v212 = vpack.c.b16 %v164, %v161
    %v213 = vpack.c.b16 %v165, %v162
    %v214 = vpack.c.b16 %v166, %v163
    %v215 = vpack.c.b16 %v170, %v167
    %v216 = vpack.c.b16 %v171, %v168
    %v217 = vpack.c.b16 %v172, %v169
    %v218 = vpack.c.b16 %v176, %v173
    %v219 = vpack.c.b16 %v177, %v174
    %v220 = vpack.c.b16 %v178, %v175
    %v221 = vpack.c.b16 %v182, %v179
    %v222 = vpack.c.b16 %v183, %v180
    %v223 = vpack.c.b16 %v184, %v181
    %v224 = vpack.c.b16 %v188, %v185
    %v225 = vpack.c.b16 %v189, %v186
    %v226 = vpack.c.b16 %v190, %v187
    %v227 = vpack.c.b16 %v194, %v191
    %v228 = vpack.c.b16 %v195, %v192
    %v229 = vpack.c.b16 %v196, %v193
    %v230 = vpack.c.b16 %v200, %v197
    %v231 = vpack.c.b16 %v201, %v198
    %v232 = vpack.c.b16 %v202, %v199
    %v233 = vpack.c.b16 %v206, %v203
    %v234 = vpack.c.b16 %v207, %v204
    %v235 = vpack.c.b16 %v208, %v205
    %v236 = vpack.c.b16 %v209, %v209
    %v237 = vpack.c.b16 %v210, %v210
    %v238 = vpack.c.b16 %v211, %v211
    %vm263 = vcmask 15360
    %v265 = vsel %vm263, %v125, 0
    %vm267 = vcmask 1040384
    %v269 = vsel %vm267, %v236, 0
    %v272 = vsel %vm267, %v237, 0
    %v275 = vsel %vm267, %v238, 0
    %277 = vmatprep.subr.bf16.mxu0 %v234
    %278 = vmatpush1.bf16.msra.mxu0 %v233
    %279 = vmatprep.subr.bf16.mxu0 %v231
    %280 = vmatpush1.bf16.msra.mxu0 %v230
    %281 = vmatprep.subr.bf16.mxu0 %v228
    %282 = vmatpush1.bf16.msra.mxu0 %v227
    %283 = vmatprep.subr.bf16.mxu0 %v225
    %284 = vmatpush1.bf16.msra.mxu0 %v224
    %285 = vmatprep.subr.bf16.mxu0 %v222
    %286 = vmatpush1.bf16.msra.mxu0 %v221
    %287 = vmatprep.subr.bf16.mxu0 %v219
    %288 = vmatpush1.bf16.msra.mxu0 %v218
    %289 = vmatprep.subr.bf16.mxu0 %v216
    %290 = vmatpush1.bf16.msra.mxu0 %v215
    %291 = vmatprep.subr.bf16.mxu0 %v213
    %292 = vmatpush1.bf16.msra.mxu0 %v212
    %293 = vmatprep.subr.bf16.mxu0 0
    %294 = vmatpush2.bf16.msra.mxu0 0
    %295 = vmatprep.subr.bf16.mxu0 0
    %296 = vmatpush2.bf16.msra.mxu0 0
    %297 = vmatprep.subr.bf16.mxu0 0
    %298 = vmatpush2.bf16.msra.mxu0 0
    %299 = vmatprep.subr.bf16.mxu0 0
    %300 = vmatpush2.bf16.msra.mxu0 0
    %301 = vmatprep.subr.bf16.mxu0 0
    %302 = vmatpush2.bf16.msra.mxu0 0
    %303 = vmatprep.subr.bf16.mxu0 0
    %304 = vmatpush2.bf16.msra.mxu0 0
    %305 = vmatprep.subr.bf16.mxu0 0
    %306 = vmatpush2.bf16.msra.mxu0 0
    %307 = vmatprep.subr.bf16.mxu0 %v272
    %308 = vmatpush2.bf16.msra.mxu0 %v269
    %309 = vmatprep.mubr.bf16.mxu0 %v265
    %310 = vmatmul.mubr.bf16.gmra.mxu0 %v124
    %v311 = vpop.f32.mrf.mxu0
    %v312 = vadd.f32 %v106, %v311
    %v313 = vpop.f32.mrf.mxu0
    %v314 = vadd.f32 %v110, %v313
    %v315 = vpop.f32.mrf.mxu0
    %v316 = vadd.f32 %v106, %v315
    %v317 = vpop.f32.mrf.mxu0
    %v318 = vadd.f32 %v110, %v317
    %319 = vdwg.mxu0
    %320 = vmatprep.subr.bf16.mxu0 0
    %321 = vmatpush1.bf16.msra.mxu0 %v235
    %322 = vmatprep.subr.bf16.mxu0 0
    %323 = vmatpush1.bf16.msra.mxu0 %v232
    %324 = vmatprep.subr.bf16.mxu0 0
    %325 = vmatpush1.bf16.msra.mxu0 %v229
    %326 = vmatprep.subr.bf16.mxu0 0
    %327 = vmatpush1.bf16.msra.mxu0 %v226
    %328 = vmatprep.subr.bf16.mxu0 0
    %329 = vmatpush1.bf16.msra.mxu0 %v223
    %330 = vmatprep.subr.bf16.mxu0 0
    %331 = vmatpush1.bf16.msra.mxu0 %v220
    %332 = vmatprep.subr.bf16.mxu0 0
    %333 = vmatpush1.bf16.msra.mxu0 %v217
    %334 = vmatprep.subr.bf16.mxu0 0
    %335 = vmatpush1.bf16.msra.mxu0 %v214
    %336 = vmatprep.subr.bf16.mxu0 0
    %337 = vmatpush2.bf16.msra.mxu0 0
    %338 = vmatprep.subr.bf16.mxu0 0
    %339 = vmatpush2.bf16.msra.mxu0 0
    %340 = vmatprep.subr.bf16.mxu0 0
    %341 = vmatpush2.bf16.msra.mxu0 0
    %342 = vmatprep.subr.bf16.mxu0 0
    %343 = vmatpush2.bf16.msra.mxu0 0
    %344 = vmatprep.subr.bf16.mxu0 0
    %345 = vmatpush2.bf16.msra.mxu0 0
    %346 = vmatprep.subr.bf16.mxu0 0
    %347 = vmatpush2.bf16.msra.mxu0 0
    %348 = vmatprep.subr.bf16.mxu0 0
    %349 = vmatpush2.bf16.msra.mxu0 0
    %350 = vmatprep.subr.bf16.mxu0 0
    %351 = vmatpush2.bf16.msra.mxu0 %v275
    %352 = vmatprep.mubr.bf16.mxu0 %v265
    %353 = vmatmul.mubr.bf16.gmra.mxu0 %v124
    %v354 = vpop.f32.mrf.mxu0
    %v355 = vadd.f32 %v114, %v354
    %v356 = vpop.f32.mrf.mxu0
    %v357 = vpop.f32.mrf.mxu0
    %v358 = vadd.f32 %v114, %v357
    %v359 = vpop.f32.mrf.mxu0
    %360 = vdwg.mxu0
    %v361 = vlaneseq
    %v362 = vand.u32 %v361, 127
    %vm363 = vcmp.lt.s32.totalorder %v362, 12
    %v364 = vadd.s32 %v362, 12
    %v365 = vsub.s32 %v362, 12
    %v366 = vsel %vm363, %v364, %v365
    %v367 = vsub.s32 23, %v362
    %v368 = vxor.u32 %v312, 2147483648
    %v369 = vxor.u32 %v314, 2147483648
    %v370 = vxor.u32 %v316, 2147483648
    %v371 = vxor.u32 %v318, 2147483648
    %v372 = vmul.f32 %v368, 1.442695
    %v373 = vpow.pop %v372
    %v374 = vmul.f32 %v369, 1.442695
    %v375 = vpow.pop %v374
    %v376 = vmul.f32 %v370, 1.442695
    %v377 = vpow.pop %v376
    %v378 = vmul.f32 %v371, 1.442695
    %v379 = vpow.pop %v378
    %v380 = vadd.f32 %v373, 1.0
    %v381 = vadd.f32 %v375, 1.0
    %v382 = vadd.f32 %v377, 1.0
    %v383 = vadd.f32 %v379, 1.0
    %v384 = vrcp.pop %v380
    %v385 = vmul.f32 1.0, %v384
    %v386 = vrcp.pop %v381
    %v387 = vmul.f32 1.0, %v386
    %v388 = vrcp.pop %v382
    %v389 = vmul.f32 1.0, %v388
    %v390 = vrcp.pop %v383
    %v391 = vmul.f32 1.0, %v390
    %v392 = vtanh.pop %v355
    %v393 = vtanh.pop %v358
    %v394 = vmul.f32 %v385, %v392
    %v395 = vmul.f32 %v389, %v393
    %v396 = vtanh.pop %v394
    %v397 = vtanh.pop %v395
    %v398 = vmul.f32 %v387, %v396
    %v399 = vmul.f32 %v391, %v397
    %v401 = vlaneseq
    %v402 = vshrl.u32 %v401, 7
    %v403 = vsub.s32 0, %v402
    %v404 = vrot.slane %v64, %v403
    %406 = vmatprep.subr.mxu0 0.0
    %407 = vmatpush1.msra.mxu0 %v63
    %408 = vmatprep.subr.mxu0 0.0
    %409 = vmatpush1.msra.mxu0 %v62
    %410 = vmatprep.subr.mxu0 0.0
    %411 = vmatpush1.msra.mxu0 %v61
    %412 = vmatprep.subr.mxu0 0.0
    %413 = vmatpush1.msra.mxu0 %v60
    %414 = vmatprep.subr.mxu0 0.0
    %415 = vmatpush1.msra.mxu0 %v59
    %416 = vmatprep.subr.mxu0 0.0
    %417 = vmatpush1.msra.mxu0 %v58
    %418 = vmatprep.subr.mxu0 0.0
    %419 = vmatpush1.msra.mxu0 %v57
    %420 = vmatprep.subr.mxu0 0.0
    %421 = vmatpush1.msra.mxu0 %v56
    %422 = vmatprep.subr.mxu0 0.0
    %423 = vmatpush1.msra.mxu0 %v55
    %424 = vmatprep.subr.mxu0 0.0
    %425 = vmatpush1.msra.mxu0 %v54
    %426 = vmatprep.subr.mxu0 0.0
    %427 = vmatpush1.msra.mxu0 %v53
    %428 = vmatprep.subr.mxu0 0.0
    %429 = vmatpush1.msra.mxu0 %v52
    %430 = vmatprep.subr.mxu0 0.0
    %431 = vmatpush1.msra.mxu0 %v51
    %432 = vmatprep.subr.mxu0 0.0
    %433 = vmatpush1.msra.mxu0 %v50
    %434 = vmatprep.subr.mxu0 0.0
    %435 = vmatpush1.msra.mxu0 %v49
    %436 = vmatprep.subr.mxu0 0.0
    %437 = vmatpush1.msra.mxu0 %v48
    %438 = vmatprep.subr.mxu0 0.0
    %439 = vmatpush2.msra.mxu0 0.0
    %440 = vmatprep.subr.mxu0 0.0
    %441 = vmatpush2.msra.mxu0 0.0
    %442 = vmatprep.subr.mxu0 0.0
    %443 = vmatpush2.msra.mxu0 0.0
    %444 = vmatprep.subr.mxu0 0.0
    %445 = vmatpush2.msra.mxu0 0.0
    %446 = vmatprep.subr.mxu0 0.0
    %447 = vmatpush2.msra.mxu0 0.0
    %448 = vmatprep.subr.mxu0 0.0
    %449 = vmatpush2.msra.mxu0 0.0
    %450 = vmatprep.subr.mxu0 0.0
    %451 = vmatpush2.msra.mxu0 0.0
    %452 = vmatprep.subr.mxu0 0.0
    %453 = vmatpush2.msra.mxu0 0.0
    %454 = vmatprep.subr.mxu0 0.0
    %455 = vmatpush2.msra.mxu0 0.0
    %456 = vmatprep.subr.mxu0 0.0
    %457 = vmatpush2.msra.mxu0 0.0
    %458 = vmatprep.subr.mxu0 0.0
    %459 = vmatpush2.msra.mxu0 0.0
    %460 = vmatprep.subr.mxu0 0.0
    %461 = vmatpush2.msra.mxu0 0.0
    %462 = vmatprep.subr.mxu0 0.0
    %463 = vmatpush2.msra.mxu0 0.0
    %464 = vmatprep.subr.mxu0 0.0
    %465 = vmatpush2.msra.mxu0 0.0
    %466 = vmatprep.subr.mxu0 0.0
    %467 = vmatpush2.msra.mxu0 0.0
    %468 = vmatprep.subr.mxu0 0.0
    %469 = vmatpush2.msra.mxu0 0.0
    %470 = vmatprep.mubr.f32.mxu0 0.0
    %471 = vmatmul.mubr.f32.gmra.mxu0 %v398
    %v472 = vpop.f32.mrf.mxu0
    %v473 = vadd.f32 %v404, %v472
    %v474 = vpop.f32.mrf.mxu0
    %475 = vmatprep.mubr.f32.mxu0 0.0
    %476 = vmatmul.mubr.f32.gmra.mxu0 %v399
    %v477 = vpop.f32.mrf.mxu0
    %v478 = vadd.f32 %v404, %v477
    %v479 = vpop.f32.mrf.mxu0
    %480 = vdwg.mxu0
    %v481 = vmul.f32 %v473, 1.442695
    %v482 = vpow.pop %v481
    %v483 = vmul.f32 %v478, 1.442695
    %v484 = vpow.pop %v483
    %v485 = vld [vmem:[%s6] sm:$0xff]
    %v486 = vld [vmem:[%s6 + $0x8] sm:$0xff]
    %v487 = vadd.f32 %v473, %v485
    %v488 = vadd.f32 %v478, %v486
    %vm489 = vcmask 195584
    %v490 = vsel %vm489, %v482, 0.0
    %491 = vadd.xlane.f32.xlu0 %v490
    %v492 = vpop.xlane.xlu0 %491
    %v493 = vsel %vm489, %v484, 0.0
    %494 = vadd.xlane.f32.xlu0 %v493
    %v495 = vpop.xlane.xlu0 %494
    %v496 = vrcp.pop %v492
    %v497 = vrcp.pop %v495
    %v498 = vmul.f32 %v482, %v496
    %v499 = vmul.f32 %v484, %v497
    %v500 = vadd.f32 %v498, 0.0
    %v501 = vadd.f32 %v499, 0.0
    %v502 = vsub.f32 1.0, %v498
    %v503 = vsub.f32 1.0, %v499
    %vm506 = vcmp.lt.s32.totalorder %v487, 0
    %vm507 = vcmp.lt.s32.totalorder %v488, 0
    %v508 = vxor.u32 %v487, 2147483647
    %v509 = vxor.u32 %v488, 2147483647
    %v510 = vsel %vm506, %v508, %v487
    %v511 = vsel %vm507, %v509, %v488
    %v512 = vand.u32 %v510, 4294967264
    %v513 = vand.u32 %v511, 4294967264
    %v514 = vor.u32 %v512, %v367
    %v515 = vor.u32 %v513, %v367
    %v516 = vsel %vm489, %v514, 2147483648
    %v517 = vand.u32 %v516, 65535
    %v518 = vshra.s32 %v516, 16
    %v519 = vcvt.s32.f32 %v517
    %v520 = vcvt.s32.f32 %v518
    %521 = vmax.xlane.f32.xlu0 %v520
    %v522 = vpop.xlane.xlu0 %521
    %vm523 = vcmp.eq.f32.partialorder %v520, %v522
    %v524 = vsel %vm523, %v519, -inf
    %525 = vmax.xlane.f32.xlu0 %v524
    %v526 = vpop.xlane.xlu0 %525
    %v527 = vcvt.f32.s32 %v526
    %v528 = vcvt.f32.s32 %v522
    %v529 = vshll.u32 %v528, 16
    %v530 = vadd.s32 %v529, %v527
    %v531 = vsel %vm489, %v515, 2147483648
    %v532 = vand.u32 %v531, 65535
    %v533 = vshra.s32 %v531, 16
    %v534 = vcvt.s32.f32 %v532
    %v535 = vcvt.s32.f32 %v533
    %536 = vmax.xlane.f32.xlu0 %v535
    %v537 = vpop.xlane.xlu0 %536
    %vm538 = vcmp.eq.f32.partialorder %v535, %v537
    %v539 = vsel %vm538, %v534, -inf
    %540 = vmax.xlane.f32.xlu0 %v539
    %v541 = vpop.xlane.xlu0 %540
    %v542 = vcvt.f32.s32 %v541
    %v543 = vcvt.f32.s32 %v537
    %v544 = vshll.u32 %v543, 16
    %v545 = vadd.s32 %v544, %v542
    %v546 = vand.u32 %v530, 31
    %v547 = vand.u32 %v545, 31
    %v548 = vsub.s32 23, %v546
    %v549 = vsub.s32 23, %v547
    %vm550 = vcmp.eq.s32.totalorder %v362, %v548
    %vm551 = vcmp.eq.s32.totalorder %v362, %v549
    %v552 = vsel %vm550, 1, 0
    %v553 = vsel %vm551, 1, 0
    %v554 = vcvt.s32.f32 %v552
    %v555 = vcvt.s32.f32 %v553
    %v556 = vadd.f32 %v554, 0.0
    %v557 = vadd.f32 %v555, 0.0
    %vm558 = vcmp.eq.s32.totalorder %v366, %v548
    %vm559 = vcmp.eq.s32.totalorder %v366, %v549
    %v560 = vsel %vm558, 1, 0
    %v561 = vsel %vm559, 1, 0
    %v562 = vcvt.s32.f32 %v560
    %v563 = vcvt.s32.f32 %v561
    %v564 = vadd.f32 %v562, 0.0
    %v565 = vadd.f32 %v563, 0.0
    %v566 = vpack.c.bf16 %v557, %v556
    %v573 = vunpack.c.l.b16 %v42
    %v574 = vunpack.c.h.b16 %v42
    %v575 = vunpack.c.l.b16 %v43
    %v576 = vunpack.c.l.b16 %v44
    %v577 = vunpack.c.h.b16 %v44
    %v578 = vunpack.c.l.b16 %v45
    %v579 = vunpack.c.l.b16 %v46
    %v580 = vunpack.c.h.b16 %v46
    %v581 = vunpack.c.l.b16 %v47
    %v582 = vpack.c.b16 %v576, %v573
    %v583 = vpack.c.b16 %v577, %v574
    %v584 = vpack.c.b16 %v578, %v575
    %v585 = vpack.c.b16 %v579, %v579
    %v586 = vpack.c.b16 %v580, %v580
    %v587 = vpack.c.b16 %v581, %v581
    %v592 = vsel %vm489, %v566, 0
    %vm594 = vcmask 1043456
    %v596 = vsel %vm594, %v585, 0
    %v599 = vsel %vm594, %v586, 0
    %v602 = vsel %vm594, %v587, 0
    %604 = vmatprep.subr.bf16.mxu0 0
    %605 = vmatpush1.bf16.msra.mxu0 0
    %606 = vmatprep.subr.bf16.mxu0 0
    %607 = vmatpush1.bf16.msra.mxu0 0
    %608 = vmatprep.subr.bf16.mxu0 0
    %609 = vmatpush1.bf16.msra.mxu0 0
    %610 = vmatprep.subr.bf16.mxu0 0
    %611 = vmatpush1.bf16.msra.mxu0 0
    %612 = vmatprep.subr.bf16.mxu0 0
    %613 = vmatpush1.bf16.msra.mxu0 0
    %614 = vmatprep.subr.bf16.mxu0 0
    %615 = vmatpush1.bf16.msra.mxu0 0
    %616 = vmatprep.subr.bf16.mxu0 %v599
    %617 = vmatpush1.bf16.msra.mxu0 %v596
    %618 = vmatprep.subr.bf16.mxu0 %v583
    %619 = vmatpush1.bf16.msra.mxu0 %v582
    %620 = vmatprep.subr.bf16.mxu0 0
    %621 = vmatpush2.bf16.msra.mxu0 0
    %622 = vmatprep.subr.bf16.mxu0 0
    %623 = vmatpush2.bf16.msra.mxu0 0
    %624 = vmatprep.subr.bf16.mxu0 0
    %625 = vmatpush2.bf16.msra.mxu0 0
    %626 = vmatprep.subr.bf16.mxu0 0
    %627 = vmatpush2.bf16.msra.mxu0 0
    %628 = vmatprep.subr.bf16.mxu0 0
    %629 = vmatpush2.bf16.msra.mxu0 0
    %630 = vmatprep.subr.bf16.mxu0 0
    %631 = vmatpush2.bf16.msra.mxu0 0
    %632 = vmatprep.subr.bf16.mxu0 0
    %633 = vmatpush2.bf16.msra.mxu0 0
    %634 = vmatprep.subr.bf16.mxu0 0
    %635 = vmatpush2.bf16.msra.mxu0 0
    %636 = vmatprep.mubr.bf16.mxu0 0
    %637 = vmatmul.mubr.bf16.gmra.mxu0 %v592
    %v638 = vpop.f32.mrf.mxu0
    %v639 = vadd.f32 0.0, %v638
    %v640 = vpop.f32.mrf.mxu0
    %v641 = vadd.f32 0.0, %v640
    %v642 = vpop.f32.mrf.mxu0
    %v643 = vadd.f32 0.0, %v642
    %v644 = vpop.f32.mrf.mxu0
    %v645 = vadd.f32 0.0, %v644
    %646 = vdwg.mxu0
    %647 = vmatprep.subr.bf16.mxu0 0
    %648 = vmatpush1.bf16.msra.mxu0 0
    %649 = vmatprep.subr.bf16.mxu0 0
    %650 = vmatpush1.bf16.msra.mxu0 0
    %651 = vmatprep.subr.bf16.mxu0 0
    %652 = vmatpush1.bf16.msra.mxu0 0
    %653 = vmatprep.subr.bf16.mxu0 0
    %654 = vmatpush1.bf16.msra.mxu0 0
    %655 = vmatprep.subr.bf16.mxu0 0
    %656 = vmatpush1.bf16.msra.mxu0 0
    %657 = vmatprep.subr.bf16.mxu0 0
    %658 = vmatpush1.bf16.msra.mxu0 0
    %659 = vmatprep.subr.bf16.mxu0 0
    %660 = vmatpush1.bf16.msra.mxu0 %v602
    %661 = vmatprep.subr.bf16.mxu0 0
    %662 = vmatpush1.bf16.msra.mxu0 %v584
    %663 = vmatprep.subr.bf16.mxu0 0
    %664 = vmatpush2.bf16.msra.mxu0 0
    %665 = vmatprep.subr.bf16.mxu0 0
    %666 = vmatpush2.bf16.msra.mxu0 0
    %667 = vmatprep.subr.bf16.mxu0 0
    %668 = vmatpush2.bf16.msra.mxu0 0
    %669 = vmatprep.subr.bf16.mxu0 0
    %670 = vmatpush2.bf16.msra.mxu0 0
    %671 = vmatprep.subr.bf16.mxu0 0
    %672 = vmatpush2.bf16.msra.mxu0 0
    %673 = vmatprep.subr.bf16.mxu0 0
    %674 = vmatpush2.bf16.msra.mxu0 0
    %675 = vmatprep.subr.bf16.mxu0 0
    %676 = vmatpush2.bf16.msra.mxu0 0
    %677 = vmatprep.subr.bf16.mxu0 0
    %678 = vmatpush2.bf16.msra.mxu0 0
    %679 = vmatprep.mubr.bf16.mxu0 0
    %680 = vmatmul.mubr.bf16.gmra.mxu0 %v592
    %v681 = vpop.f32.mrf.mxu0
    %v682 = vadd.f32 0.0, %v681
    %v683 = vpop.f32.mrf.mxu0
    %v684 = vpop.f32.mrf.mxu0
    %v685 = vadd.f32 0.0, %v684
    %v686 = vpop.f32.mrf.mxu0
    %687 = vdwg.mxu0
    %v688 = vadd.f32 %v312, %v639
    %v689 = vadd.f32 %v314, %v641
    %v690 = vadd.f32 %v355, %v682
    %v691 = vadd.f32 %v316, %v643
    %v692 = vadd.f32 %v318, %v645
    %v693 = vadd.f32 %v358, %v685
    %v694 = vxor.u32 %v688, 2147483648
    %v695 = vxor.u32 %v689, 2147483648
    %v696 = vxor.u32 %v691, 2147483648
    %v697 = vxor.u32 %v692, 2147483648
    %v698 = vmul.f32 %v694, 1.442695
    %v699 = vpow.pop %v698
    %v700 = vmul.f32 %v695, 1.442695
    %v701 = vpow.pop %v700
    %v702 = vmul.f32 %v696, 1.442695
    %v703 = vpow.pop %v702
    %v704 = vmul.f32 %v697, 1.442695
    %v705 = vpow.pop %v704
    %v706 = vadd.f32 %v699, 1.0
    %v707 = vadd.f32 %v701, 1.0
    %v708 = vadd.f32 %v703, 1.0
    %v709 = vadd.f32 %v705, 1.0
    %v710 = vrcp.pop %v706
    %v711 = vmul.f32 1.0, %v710
    %v712 = vrcp.pop %v707
    %v713 = vmul.f32 1.0, %v712
    %v714 = vrcp.pop %v708
    %v715 = vmul.f32 1.0, %v714
    %v716 = vrcp.pop %v709
    %v717 = vmul.f32 1.0, %v716
    %v718 = vtanh.pop %v690
    %v719 = vtanh.pop %v693
    %v720 = vmul.f32 %v711, %v718
    %v721 = vmul.f32 %v715, %v719
    %v722 = vtanh.pop %v720
    %v723 = vtanh.pop %v721
    %v724 = vmul.f32 %v713, %v722
    %v725 = vmul.f32 %v717, %v723
    %726 = vmatprep.subr.mxu0 0.0
    %727 = vmatpush1.msra.mxu0 %v63
    %728 = vmatprep.subr.mxu0 0.0
    %729 = vmatpush1.msra.mxu0 %v62
    %730 = vmatprep.subr.mxu0 0.0
    %731 = vmatpush1.msra.mxu0 %v61
    %732 = vmatprep.subr.mxu0 0.0
    %733 = vmatpush1.msra.mxu0 %v60
    %734 = vmatprep.subr.mxu0 0.0
    %735 = vmatpush1.msra.mxu0 %v59
    %736 = vmatprep.subr.mxu0 0.0
    %737 = vmatpush1.msra.mxu0 %v58
    %738 = vmatprep.subr.mxu0 0.0
    %739 = vmatpush1.msra.mxu0 %v57
    %740 = vmatprep.subr.mxu0 0.0
    %741 = vmatpush1.msra.mxu0 %v56
    %742 = vmatprep.subr.mxu0 0.0
    %743 = vmatpush1.msra.mxu0 %v55
    %744 = vmatprep.subr.mxu0 0.0
    %745 = vmatpush1.msra.mxu0 %v54
    %746 = vmatprep.subr.mxu0 0.0
    %747 = vmatpush1.msra.mxu0 %v53
    %748 = vmatprep.subr.mxu0 0.0
    %749 = vmatpush1.msra.mxu0 %v52
    %750 = vmatprep.subr.mxu0 0.0
    %751 = vmatpush1.msra.mxu0 %v51
    %752 = vmatprep.subr.mxu0 0.0
    %753 = vmatpush1.msra.mxu0 %v50
    %754 = vmatprep.subr.mxu0 0.0
    %755 = vmatpush1.msra.mxu0 %v49
    %756 = vmatprep.subr.mxu0 0.0
    %757 = vmatpush1.msra.mxu0 %v48
    %758 = vmatprep.subr.mxu0 0.0
    %759 = vmatpush2.msra.mxu0 0.0
    %760 = vmatprep.subr.mxu0 0.0
    %761 = vmatpush2.msra.mxu0 0.0
    %762 = vmatprep.subr.mxu0 0.0
    %763 = vmatpush2.msra.mxu0 0.0
    %764 = vmatprep.subr.mxu0 0.0
    %765 = vmatpush2.msra.mxu0 0.0
    %766 = vmatprep.subr.mxu0 0.0
    %767 = vmatpush2.msra.mxu0 0.0
    %768 = vmatprep.subr.mxu0 0.0
    %769 = vmatpush2.msra.mxu0 0.0
    %770 = vmatprep.subr.mxu0 0.0
    %771 = vmatpush2.msra.mxu0 0.0
    %772 = vmatprep.subr.mxu0 0.0
    %773 = vmatpush2.msra.mxu0 0.0
    %774 = vmatprep.subr.mxu0 0.0
    %775 = vmatpush2.msra.mxu0 0.0
    %776 = vmatprep.subr.mxu0 0.0
    %777 = vmatpush2.msra.mxu0 0.0
    %778 = vmatprep.subr.mxu0 0.0
    %779 = vmatpush2.msra.mxu0 0.0
    %780 = vmatprep.subr.mxu0 0.0
    %781 = vmatpush2.msra.mxu0 0.0
    %782 = vmatprep.subr.mxu0 0.0
    %783 = vmatpush2.msra.mxu0 0.0
    %784 = vmatprep.subr.mxu0 0.0
    %785 = vmatpush2.msra.mxu0 0.0
    %786 = vmatprep.subr.mxu0 0.0
    %787 = vmatpush2.msra.mxu0 0.0
    %788 = vmatprep.subr.mxu0 0.0
    %789 = vmatpush2.msra.mxu0 0.0
    %790 = vmatprep.mubr.f32.mxu0 0.0
    %791 = vmatmul.mubr.f32.gmra.mxu0 %v724
    %v792 = vpop.f32.mrf.mxu0
    %v793 = vadd.f32 %v404, %v792
    %v794 = vpop.f32.mrf.mxu0
    %795 = vmatprep.mubr.f32.mxu0 0.0
    %796 = vmatmul.mubr.f32.gmra.mxu0 %v725
    %v797 = vpop.f32.mrf.mxu0
    %v798 = vadd.f32 %v404, %v797
    %v799 = vpop.f32.mrf.mxu0
    %800 = vdwg.mxu0
    %v801 = vmul.f32 %v793, 1.442695
    %v802 = vpow.pop %v801
    %v803 = vmul.f32 %v798, 1.442695
    %v804 = vpow.pop %v803
    %v805 = vsub.f32 1.0, %v556
    %v806 = vsub.f32 1.0, %v557
    %v807 = vsub.f32 1.0, %v564
    %v808 = vsub.f32 1.0, %v565
    %v809 = vmul.f32 %v805, %v807
    %v810 = vmul.f32 %v806, %v808
    %v811 = vmul.f32 %v809, %v802
    %v812 = vmul.f32 %v810, %v804
    %vm813 = vcmp.gt.f32.partialorder %v809, 0.0
    %vm814 = vcmp.gt.f32.partialorder %v810, 0.0
    %s815 = scalar_lea.vmem %s6, 16
    %v816 = vld [vmem:[%s815] sm:$0xff]
    %v817 = vld [vmem:[%s815 + $0x8] sm:$0xff]
    %v818 = vadd.f32 %v793, %v816
    %v819 = vadd.f32 %v798, %v817
    %v820 = vsel %vm813, %v818, -inf
    %v821 = vsel %vm814, %v819, -inf
    %v822 = vsel %vm489, %v811, 0.0
    %823 = vadd.xlane.f32.xlu0 %v822
    %v824 = vpop.xlane.xlu0 %823
    %v825 = vsel %vm489, %v812, 0.0
    %826 = vadd.xlane.f32.xlu0 %v825
    %v827 = vpop.xlane.xlu0 %826
    %v828 = vrcp.pop %v824
    %v829 = vrcp.pop %v827
    %v830 = vmul.f32 %v811, %v828
    %v831 = vmul.f32 %v812, %v829
    %v832 = vmul.f32 %v502, %v830
    %v833 = vmul.f32 %v503, %v831
    %v834 = vadd.f32 %v500, %v832
    %v835 = vadd.f32 %v501, %v833
    %v836 = vsub.f32 1.0, %v830
    %v837 = vsub.f32 1.0, %v831
    %v838 = vmul.f32 %v502, %v836
    %v839 = vmul.f32 %v503, %v837
    %vm842 = vcmp.lt.s32.totalorder %v820, 0
    %vm843 = vcmp.lt.s32.totalorder %v821, 0
    %v844 = vxor.u32 %v820, 2147483647
    %v845 = vxor.u32 %v821, 2147483647
    %v846 = vsel %vm842, %v844, %v820
    %v847 = vsel %vm843, %v845, %v821
    %v848 = vand.u32 %v846, 4294967264
    %v849 = vand.u32 %v847, 4294967264
    %v850 = vor.u32 %v848, %v367
    %v851 = vor.u32 %v849, %v367
    %v852 = vsel %vm489, %v850, 2147483648
    %v853 = vand.u32 %v852, 65535
    %v854 = vshra.s32 %v852, 16
    %v855 = vcvt.s32.f32 %v853
    %v856 = vcvt.s32.f32 %v854
    %857 = vmax.xlane.f32.xlu0 %v856
    %v858 = vpop.xlane.xlu0 %857
    %vm859 = vcmp.eq.f32.partialorder %v856, %v858
    %v860 = vsel %vm859, %v855, -inf
    %861 = vmax.xlane.f32.xlu0 %v860
    %v862 = vpop.xlane.xlu0 %861
    %v863 = vcvt.f32.s32 %v862
    %v864 = vcvt.f32.s32 %v858
    %v865 = vshll.u32 %v864, 16
    %v866 = vadd.s32 %v865, %v863
    %v867 = vsel %vm489, %v851, 2147483648
    %v868 = vand.u32 %v867, 65535
    %v869 = vshra.s32 %v867, 16
    %v870 = vcvt.s32.f32 %v868
    %v871 = vcvt.s32.f32 %v869
    %872 = vmax.xlane.f32.xlu0 %v871
    %v873 = vpop.xlane.xlu0 %872
    %vm874 = vcmp.eq.f32.partialorder %v871, %v873
    %v875 = vsel %vm874, %v870, -inf
    %876 = vmax.xlane.f32.xlu0 %v875
    %v877 = vpop.xlane.xlu0 %876
    %v878 = vcvt.f32.s32 %v877
    %v879 = vcvt.f32.s32 %v873
    %v880 = vshll.u32 %v879, 16
    %v881 = vadd.s32 %v880, %v878
    %v882 = vand.u32 %v866, 31
    %v883 = vand.u32 %v881, 31
    %v884 = vsub.s32 23, %v882
    %v885 = vsub.s32 23, %v883
    %vm886 = vcmp.eq.s32.totalorder %v362, %v884
    %vm887 = vcmp.eq.s32.totalorder %v362, %v885
    %v888 = vsel %vm886, 1, 0
    %v889 = vsel %vm887, 1, 0
    %v890 = vcvt.s32.f32 %v888
    %v891 = vcvt.s32.f32 %v889
    %v892 = vadd.f32 %v556, %v890
    %v893 = vadd.f32 %v557, %v891
    %vm894 = vcmp.eq.s32.totalorder %v366, %v884
    %vm895 = vcmp.eq.s32.totalorder %v366, %v885
    %v896 = vsel %vm894, 1, 0
    %v897 = vsel %vm895, 1, 0
    %v898 = vcvt.s32.f32 %v896
    %v899 = vcvt.s32.f32 %v897
    %v900 = vadd.f32 %v564, %v898
    %v901 = vadd.f32 %v565, %v899
    %v902 = vpack.c.bf16 %v893, %v892
    %v904 = vsel %vm489, %v902, 0
    %906 = vmatprep.subr.bf16.mxu0 0
    %907 = vmatpush1.bf16.msra.mxu0 0
    %908 = vmatprep.subr.bf16.mxu0 0
    %909 = vmatpush1.bf16.msra.mxu0 0
    %910 = vmatprep.subr.bf16.mxu0 0
    %911 = vmatpush1.bf16.msra.mxu0 0
    %912 = vmatprep.subr.bf16.mxu0 0
    %913 = vmatpush1.bf16.msra.mxu0 0
    %914 = vmatprep.subr.bf16.mxu0 0
    %915 = vmatpush1.bf16.msra.mxu0 0
    %916 = vmatprep.subr.bf16.mxu0 0
    %917 = vmatpush1.bf16.msra.mxu0 0
    %918 = vmatprep.subr.bf16.mxu0 %v599
    %919 = vmatpush1.bf16.msra.mxu0 %v596
    %920 = vmatprep.subr.bf16.mxu0 %v583
    %921 = vmatpush1.bf16.msra.mxu0 %v582
    %922 = vmatprep.subr.bf16.mxu0 0
    %923 = vmatpush2.bf16.msra.mxu0 0
    %924 = vmatprep.subr.bf16.mxu0 0
    %925 = vmatpush2.bf16.msra.mxu0 0
    %926 = vmatprep.subr.bf16.mxu0 0
    %927 = vmatpush2.bf16.msra.mxu0 0
    %928 = vmatprep.subr.bf16.mxu0 0
    %929 = vmatpush2.bf16.msra.mxu0 0
    %930 = vmatprep.subr.bf16.mxu0 0
    %931 = vmatpush2.bf16.msra.mxu0 0
    %932 = vmatprep.subr.bf16.mxu0 0
    %933 = vmatpush2.bf16.msra.mxu0 0
    %934 = vmatprep.subr.bf16.mxu0 0
    %935 = vmatpush2.bf16.msra.mxu0 0
    %936 = vmatprep.subr.bf16.mxu0 0
    %937 = vmatpush2.bf16.msra.mxu0 0
    %938 = vmatprep.mubr.bf16.mxu0 0
    %939 = vmatmul.mubr.bf16.gmra.mxu0 %v904
    %v940 = vpop.f32.mrf.mxu0
    %v941 = vadd.f32 0.0, %v940
    %v942 = vpop.f32.mrf.mxu0
    %v943 = vadd.f32 0.0, %v942
    %v944 = vpop.f32.mrf.mxu0
    %v945 = vadd.f32 0.0, %v944
    %v946 = vpop.f32.mrf.mxu0
    %v947 = vadd.f32 0.0, %v946
    %948 = vdwg.mxu0
    %949 = vmatprep.subr.bf16.mxu0 0
    %950 = vmatpush1.bf16.msra.mxu0 0
    %951 = vmatprep.subr.bf16.mxu0 0
    %952 = vmatpush1.bf16.msra.mxu0 0
    %953 = vmatprep.subr.bf16.mxu0 0
    %954 = vmatpush1.bf16.msra.mxu0 0
    %955 = vmatprep.subr.bf16.mxu0 0
    %956 = vmatpush1.bf16.msra.mxu0 0
    %957 = vmatprep.subr.bf16.mxu0 0
    %958 = vmatpush1.bf16.msra.mxu0 0
    %959 = vmatprep.subr.bf16.mxu0 0
    %960 = vmatpush1.bf16.msra.mxu0 0
    %961 = vmatprep.subr.bf16.mxu0 0
    %962 = vmatpush1.bf16.msra.mxu0 %v602
    %963 = vmatprep.subr.bf16.mxu0 0
    %964 = vmatpush1.bf16.msra.mxu0 %v584
    %965 = vmatprep.subr.bf16.mxu0 0
    %966 = vmatpush2.bf16.msra.mxu0 0
    %967 = vmatprep.subr.bf16.mxu0 0
    %968 = vmatpush2.bf16.msra.mxu0 0
    %969 = vmatprep.subr.bf16.mxu0 0
    %970 = vmatpush2.bf16.msra.mxu0 0
    %971 = vmatprep.subr.bf16.mxu0 0
    %972 = vmatpush2.bf16.msra.mxu0 0
    %973 = vmatprep.subr.bf16.mxu0 0
    %974 = vmatpush2.bf16.msra.mxu0 0
    %975 = vmatprep.subr.bf16.mxu0 0
    %976 = vmatpush2.bf16.msra.mxu0 0
    %977 = vmatprep.subr.bf16.mxu0 0
    %978 = vmatpush2.bf16.msra.mxu0 0
    %979 = vmatprep.subr.bf16.mxu0 0
    %980 = vmatpush2.bf16.msra.mxu0 0
    %981 = vmatprep.mubr.bf16.mxu0 0
    %982 = vmatmul.mubr.bf16.gmra.mxu0 %v904
    %v983 = vpop.f32.mrf.mxu0
    %v984 = vadd.f32 0.0, %v983
    %v985 = vpop.f32.mrf.mxu0
    %v986 = vpop.f32.mrf.mxu0
    %v987 = vadd.f32 0.0, %v986
    %v988 = vpop.f32.mrf.mxu0
    %989 = vdwg.mxu0
    %v990 = vadd.f32 %v312, %v941
    %v991 = vadd.f32 %v314, %v943
    %v992 = vadd.f32 %v355, %v984
    %v993 = vadd.f32 %v316, %v945
    %v994 = vadd.f32 %v318, %v947
    %v995 = vadd.f32 %v358, %v987
    %v996 = vxor.u32 %v990, 2147483648
    %v997 = vxor.u32 %v991, 2147483648
    %v998 = vxor.u32 %v993, 2147483648
    %v999 = vxor.u32 %v994, 2147483648
    %v1000 = vmul.f32 %v996, 1.442695
    %v1001 = vpow.pop %v1000
    %v1002 = vmul.f32 %v997, 1.442695
    %v1003 = vpow.pop %v1002
    %v1004 = vmul.f32 %v998, 1.442695
    %v1005 = vpow.pop %v1004
    %v1006 = vmul.f32 %v999, 1.442695
    %v1007 = vpow.pop %v1006
    %v1008 = vadd.f32 %v1001, 1.0
    %v1009 = vadd.f32 %v1003, 1.0
    %v1010 = vadd.f32 %v1005, 1.0
    %v1011 = vadd.f32 %v1007, 1.0
    %v1012 = vrcp.pop %v1008
    %v1013 = vmul.f32 1.0, %v1012
    %v1014 = vrcp.pop %v1009
    %v1015 = vmul.f32 1.0, %v1014
    %v1016 = vrcp.pop %v1010
    %v1017 = vmul.f32 1.0, %v1016
    %v1018 = vrcp.pop %v1011
    %v1019 = vmul.f32 1.0, %v1018
    %v1020 = vtanh.pop %v992
    %v1021 = vtanh.pop %v995
    %v1022 = vmul.f32 %v1013, %v1020
    %v1023 = vmul.f32 %v1017, %v1021
    %v1024 = vtanh.pop %v1022
    %v1025 = vtanh.pop %v1023
    %v1026 = vmul.f32 %v1015, %v1024
    %v1027 = vmul.f32 %v1019, %v1025
    %1028 = vmatprep.subr.mxu0 0.0
    %1029 = vmatpush1.msra.mxu0 %v63
    %1030 = vmatprep.subr.mxu0 0.0
    %1031 = vmatpush1.msra.mxu0 %v62
    %1032 = vmatprep.subr.mxu0 0.0
    %1033 = vmatpush1.msra.mxu0 %v61
    %1034 = vmatprep.subr.mxu0 0.0
    %1035 = vmatpush1.msra.mxu0 %v60
    %1036 = vmatprep.subr.mxu0 0.0
    %1037 = vmatpush1.msra.mxu0 %v59
    %1038 = vmatprep.subr.mxu0 0.0
    %1039 = vmatpush1.msra.mxu0 %v58
    %1040 = vmatprep.subr.mxu0 0.0
    %1041 = vmatpush1.msra.mxu0 %v57
    %1042 = vmatprep.subr.mxu0 0.0
    %1043 = vmatpush1.msra.mxu0 %v56
    %1044 = vmatprep.subr.mxu0 0.0
    %1045 = vmatpush1.msra.mxu0 %v55
    %1046 = vmatprep.subr.mxu0 0.0
    %1047 = vmatpush1.msra.mxu0 %v54
    %1048 = vmatprep.subr.mxu0 0.0
    %1049 = vmatpush1.msra.mxu0 %v53
    %1050 = vmatprep.subr.mxu0 0.0
    %1051 = vmatpush1.msra.mxu0 %v52
    %1052 = vmatprep.subr.mxu0 0.0
    %1053 = vmatpush1.msra.mxu0 %v51
    %1054 = vmatprep.subr.mxu0 0.0
    %1055 = vmatpush1.msra.mxu0 %v50
    %1056 = vmatprep.subr.mxu0 0.0
    %1057 = vmatpush1.msra.mxu0 %v49
    %1058 = vmatprep.subr.mxu0 0.0
    %1059 = vmatpush1.msra.mxu0 %v48
    %1060 = vmatprep.subr.mxu0 0.0
    %1061 = vmatpush2.msra.mxu0 0.0
    %1062 = vmatprep.subr.mxu0 0.0
    %1063 = vmatpush2.msra.mxu0 0.0
    %1064 = vmatprep.subr.mxu0 0.0
    %1065 = vmatpush2.msra.mxu0 0.0
    %1066 = vmatprep.subr.mxu0 0.0
    %1067 = vmatpush2.msra.mxu0 0.0
    %1068 = vmatprep.subr.mxu0 0.0
    %1069 = vmatpush2.msra.mxu0 0.0
    %1070 = vmatprep.subr.mxu0 0.0
    %1071 = vmatpush2.msra.mxu0 0.0
    %1072 = vmatprep.subr.mxu0 0.0
    %1073 = vmatpush2.msra.mxu0 0.0
    %1074 = vmatprep.subr.mxu0 0.0
    %1075 = vmatpush2.msra.mxu0 0.0
    %1076 = vmatprep.subr.mxu0 0.0
    %1077 = vmatpush2.msra.mxu0 0.0
    %1078 = vmatprep.subr.mxu0 0.0
    %1079 = vmatpush2.msra.mxu0 0.0
    %1080 = vmatprep.subr.mxu0 0.0
    %1081 = vmatpush2.msra.mxu0 0.0
    %1082 = vmatprep.subr.mxu0 0.0
    %1083 = vmatpush2.msra.mxu0 0.0
    %1084 = vmatprep.subr.mxu0 0.0
    %1085 = vmatpush2.msra.mxu0 0.0
    %1086 = vmatprep.subr.mxu0 0.0
    %1087 = vmatpush2.msra.mxu0 0.0
    %1088 = vmatprep.subr.mxu0 0.0
    %1089 = vmatpush2.msra.mxu0 0.0
    %1090 = vmatprep.subr.mxu0 0.0
    %1091 = vmatpush2.msra.mxu0 0.0
    %1092 = vmatprep.mubr.f32.mxu0 0.0
    %1093 = vmatmul.mubr.f32.gmra.mxu0 %v1026
    %v1094 = vpop.f32.mrf.mxu0
    %v1095 = vadd.f32 %v404, %v1094
    %v1096 = vpop.f32.mrf.mxu0
    %1097 = vmatprep.mubr.f32.mxu0 0.0
    %1098 = vmatmul.mubr.f32.gmra.mxu0 %v1027
    %v1099 = vpop.f32.mrf.mxu0
    %v1100 = vadd.f32 %v404, %v1099
    %v1101 = vpop.f32.mrf.mxu0
    %1102 = vdwg.mxu0
    %v1103 = vmul.f32 %v1095, 1.442695
    %v1104 = vpow.pop %v1103
    %v1105 = vmul.f32 %v1100, 1.442695
    %v1106 = vpow.pop %v1105
    %v1107 = vsub.f32 1.0, %v892
    %v1108 = vsub.f32 1.0, %v893
    %v1109 = vsub.f32 1.0, %v900
    %v1110 = vsub.f32 1.0, %v901
    %v1111 = vmul.f32 %v1107, %v1109
    %v1112 = vmul.f32 %v1108, %v1110
    %v1113 = vmul.f32 %v1111, %v1104
    %v1114 = vmul.f32 %v1112, %v1106
    %vm1115 = vcmp.gt.f32.partialorder %v1111, 0.0
    %vm1116 = vcmp.gt.f32.partialorder %v1112, 0.0
    %s1117 = scalar_lea.vmem %s6, 32
    %v1118 = vld [vmem:[%s1117] sm:$0xff]
    %v1119 = vld [vmem:[%s1117 + $0x8] sm:$0xff]
    %v1120 = vadd.f32 %v1095, %v1118
    %v1121 = vadd.f32 %v1100, %v1119
    %v1122 = vsel %vm1115, %v1120, -inf
    %v1123 = vsel %vm1116, %v1121, -inf
    %v1124 = vsel %vm489, %v1113, 0.0
    %1125 = vadd.xlane.f32.xlu0 %v1124
    %v1126 = vpop.xlane.xlu0 %1125
    %v1127 = vsel %vm489, %v1114, 0.0
    %1128 = vadd.xlane.f32.xlu0 %v1127
    %v1129 = vpop.xlane.xlu0 %1128
    %v1130 = vrcp.pop %v1126
    %v1131 = vrcp.pop %v1129
    %v1132 = vmul.f32 %v1113, %v1130
    %v1133 = vmul.f32 %v1114, %v1131
    %v1134 = vmul.f32 %v838, %v1132
    %v1135 = vmul.f32 %v839, %v1133
    %v1136 = vadd.f32 %v834, %v1134
    %v1137 = vadd.f32 %v835, %v1135
    %v1138 = vsub.f32 1.0, %v1132
    %v1139 = vsub.f32 1.0, %v1133
    %v1140 = vmul.f32 %v838, %v1138
    %v1141 = vmul.f32 %v839, %v1139
    %vm1144 = vcmp.lt.s32.totalorder %v1122, 0
    %vm1145 = vcmp.lt.s32.totalorder %v1123, 0
    %v1146 = vxor.u32 %v1122, 2147483647
    %v1147 = vxor.u32 %v1123, 2147483647
    %v1148 = vsel %vm1144, %v1146, %v1122
    %v1149 = vsel %vm1145, %v1147, %v1123
    %v1150 = vand.u32 %v1148, 4294967264
    %v1151 = vand.u32 %v1149, 4294967264
    %v1152 = vor.u32 %v1150, %v367
    %v1153 = vor.u32 %v1151, %v367
    %v1154 = vsel %vm489, %v1152, 2147483648
    %v1155 = vand.u32 %v1154, 65535
    %v1156 = vshra.s32 %v1154, 16
    %v1157 = vcvt.s32.f32 %v1155
    %v1158 = vcvt.s32.f32 %v1156
    %1159 = vmax.xlane.f32.xlu0 %v1158
    %v1160 = vpop.xlane.xlu0 %1159
    %vm1161 = vcmp.eq.f32.partialorder %v1158, %v1160
    %v1162 = vsel %vm1161, %v1157, -inf
    %1163 = vmax.xlane.f32.xlu0 %v1162
    %v1164 = vpop.xlane.xlu0 %1163
    %v1165 = vcvt.f32.s32 %v1164
    %v1166 = vcvt.f32.s32 %v1160
    %v1167 = vshll.u32 %v1166, 16
    %v1168 = vadd.s32 %v1167, %v1165
    %v1169 = vsel %vm489, %v1153, 2147483648
    %v1170 = vand.u32 %v1169, 65535
    %v1171 = vshra.s32 %v1169, 16
    %v1172 = vcvt.s32.f32 %v1170
    %v1173 = vcvt.s32.f32 %v1171
    %1174 = vmax.xlane.f32.xlu0 %v1173
    %v1175 = vpop.xlane.xlu0 %1174
    %vm1176 = vcmp.eq.f32.partialorder %v1173, %v1175
    %v1177 = vsel %vm1176, %v1172, -inf
    %1178 = vmax.xlane.f32.xlu0 %v1177
    %v1179 = vpop.xlane.xlu0 %1178
    %v1180 = vcvt.f32.s32 %v1179
    %v1181 = vcvt.f32.s32 %v1175
    %v1182 = vshll.u32 %v1181, 16
    %v1183 = vadd.s32 %v1182, %v1180
    %v1184 = vand.u32 %v1168, 31
    %v1185 = vand.u32 %v1183, 31
    %v1186 = vsub.s32 23, %v1184
    %v1187 = vsub.s32 23, %v1185
    %vm1188 = vcmp.eq.s32.totalorder %v362, %v1186
    %vm1189 = vcmp.eq.s32.totalorder %v362, %v1187
    %v1190 = vsel %vm1188, 1, 0
    %v1191 = vsel %vm1189, 1, 0
    %v1192 = vcvt.s32.f32 %v1190
    %v1193 = vcvt.s32.f32 %v1191
    %v1194 = vadd.f32 %v892, %v1192
    %v1195 = vadd.f32 %v893, %v1193
    %vm1196 = vcmp.eq.s32.totalorder %v366, %v1186
    %vm1197 = vcmp.eq.s32.totalorder %v366, %v1187
    %v1198 = vsel %vm1196, 1, 0
    %v1199 = vsel %vm1197, 1, 0
    %v1200 = vcvt.s32.f32 %v1198
    %v1201 = vcvt.s32.f32 %v1199
    %v1202 = vadd.f32 %v900, %v1200
    %v1203 = vadd.f32 %v901, %v1201
    %v1204 = vpack.c.bf16 %v1195, %v1194
    %v1206 = vsel %vm489, %v1204, 0
    %1208 = vmatprep.subr.bf16.mxu0 0
    %1209 = vmatpush1.bf16.msra.mxu0 0
    %1210 = vmatprep.subr.bf16.mxu0 0
    %1211 = vmatpush1.bf16.msra.mxu0 0
    %1212 = vmatprep.subr.bf16.mxu0 0
    %1213 = vmatpush1.bf16.msra.mxu0 0
    %1214 = vmatprep.subr.bf16.mxu0 0
    %1215 = vmatpush1.bf16.msra.mxu0 0
    %1216 = vmatprep.subr.bf16.mxu0 0
    %1217 = vmatpush1.bf16.msra.mxu0 0
    %1218 = vmatprep.subr.bf16.mxu0 0
    %1219 = vmatpush1.bf16.msra.mxu0 0
    %1220 = vmatprep.subr.bf16.mxu0 %v599
    %1221 = vmatpush1.bf16.msra.mxu0 %v596
    %1222 = vmatprep.subr.bf16.mxu0 %v583
    %1223 = vmatpush1.bf16.msra.mxu0 %v582
    %1224 = vmatprep.subr.bf16.mxu0 0
    %1225 = vmatpush2.bf16.msra.mxu0 0
    %1226 = vmatprep.subr.bf16.mxu0 0
    %1227 = vmatpush2.bf16.msra.mxu0 0
    %1228 = vmatprep.subr.bf16.mxu0 0
    %1229 = vmatpush2.bf16.msra.mxu0 0
    %1230 = vmatprep.subr.bf16.mxu0 0
    %1231 = vmatpush2.bf16.msra.mxu0 0
    %1232 = vmatprep.subr.bf16.mxu0 0
    %1233 = vmatpush2.bf16.msra.mxu0 0
    %1234 = vmatprep.subr.bf16.mxu0 0
    %1235 = vmatpush2.bf16.msra.mxu0 0
    %1236 = vmatprep.subr.bf16.mxu0 0
    %1237 = vmatpush2.bf16.msra.mxu0 0
    %1238 = vmatprep.subr.bf16.mxu0 0
    %1239 = vmatpush2.bf16.msra.mxu0 0
    %1240 = vmatprep.mubr.bf16.mxu0 0
    %1241 = vmatmul.mubr.bf16.gmra.mxu0 %v1206
    %v1242 = vpop.f32.mrf.mxu0
    %v1243 = vadd.f32 0.0, %v1242
    %v1244 = vpop.f32.mrf.mxu0
    %v1245 = vadd.f32 0.0, %v1244
    %v1246 = vpop.f32.mrf.mxu0
    %v1247 = vadd.f32 0.0, %v1246
    %v1248 = vpop.f32.mrf.mxu0
    %v1249 = vadd.f32 0.0, %v1248
    %1250 = vdwg.mxu0
    %1251 = vmatprep.subr.bf16.mxu0 0
    %1252 = vmatpush1.bf16.msra.mxu0 0
    %1253 = vmatprep.subr.bf16.mxu0 0
    %1254 = vmatpush1.bf16.msra.mxu0 0
    %1255 = vmatprep.subr.bf16.mxu0 0
    %1256 = vmatpush1.bf16.msra.mxu0 0
    %1257 = vmatprep.subr.bf16.mxu0 0
    %1258 = vmatpush1.bf16.msra.mxu0 0
    %1259 = vmatprep.subr.bf16.mxu0 0
    %1260 = vmatpush1.bf16.msra.mxu0 0
    %1261 = vmatprep.subr.bf16.mxu0 0
    %1262 = vmatpush1.bf16.msra.mxu0 0
    %1263 = vmatprep.subr.bf16.mxu0 0
    %1264 = vmatpush1.bf16.msra.mxu0 %v602
    %1265 = vmatprep.subr.bf16.mxu0 0
    %1266 = vmatpush1.bf16.msra.mxu0 %v584
    %1267 = vmatprep.subr.bf16.mxu0 0
    %1268 = vmatpush2.bf16.msra.mxu0 0
    %1269 = vmatprep.subr.bf16.mxu0 0
    %1270 = vmatpush2.bf16.msra.mxu0 0
    %1271 = vmatprep.subr.bf16.mxu0 0
    %1272 = vmatpush2.bf16.msra.mxu0 0
    %1273 = vmatprep.subr.bf16.mxu0 0
    %1274 = vmatpush2.bf16.msra.mxu0 0
    %1275 = vmatprep.subr.bf16.mxu0 0
    %1276 = vmatpush2.bf16.msra.mxu0 0
    %1277 = vmatprep.subr.bf16.mxu0 0
    %1278 = vmatpush2.bf16.msra.mxu0 0
    %1279 = vmatprep.subr.bf16.mxu0 0
    %1280 = vmatpush2.bf16.msra.mxu0 0
    %1281 = vmatprep.subr.bf16.mxu0 0
    %1282 = vmatpush2.bf16.msra.mxu0 0
    %1283 = vmatprep.mubr.bf16.mxu0 0
    %1284 = vmatmul.mubr.bf16.gmra.mxu0 %v1206
    %v1285 = vpop.f32.mrf.mxu0
    %v1286 = vadd.f32 0.0, %v1285
    %v1287 = vpop.f32.mrf.mxu0
    %v1288 = vpop.f32.mrf.mxu0
    %v1289 = vadd.f32 0.0, %v1288
    %v1290 = vpop.f32.mrf.mxu0
    %1291 = vdwg.mxu0
    %v1292 = vadd.f32 %v312, %v1243
    %v1293 = vadd.f32 %v314, %v1245
    %v1294 = vadd.f32 %v355, %v1286
    %v1295 = vadd.f32 %v316, %v1247
    %v1296 = vadd.f32 %v318, %v1249
    %v1297 = vadd.f32 %v358, %v1289
    %v1298 = vxor.u32 %v1292, 2147483648
    %v1299 = vxor.u32 %v1293, 2147483648
    %v1300 = vxor.u32 %v1295, 2147483648
    %v1301 = vxor.u32 %v1296, 2147483648
    %v1302 = vmul.f32 %v1298, 1.442695
    %v1303 = vpow.pop %v1302
    %v1304 = vmul.f32 %v1299, 1.442695
    %v1305 = vpow.pop %v1304
    %v1306 = vmul.f32 %v1300, 1.442695
    %v1307 = vpow.pop %v1306
    %v1308 = vmul.f32 %v1301, 1.442695
    %v1309 = vpow.pop %v1308
    %v1310 = vadd.f32 %v1303, 1.0
    %v1311 = vadd.f32 %v1305, 1.0
    %v1312 = vadd.f32 %v1307, 1.0
    %v1313 = vadd.f32 %v1309, 1.0
    %v1314 = vrcp.pop %v1310
    %v1315 = vmul.f32 1.0, %v1314
    %v1316 = vrcp.pop %v1311
    %v1317 = vmul.f32 1.0, %v1316
    %v1318 = vrcp.pop %v1312
    %v1319 = vmul.f32 1.0, %v1318
    %v1320 = vrcp.pop %v1313
    %v1321 = vmul.f32 1.0, %v1320
    %v1322 = vtanh.pop %v1294
    %v1323 = vtanh.pop %v1297
    %v1324 = vmul.f32 %v1315, %v1322
    %v1325 = vmul.f32 %v1319, %v1323
    %v1326 = vtanh.pop %v1324
    %v1327 = vtanh.pop %v1325
    %v1328 = vmul.f32 %v1317, %v1326
    %v1329 = vmul.f32 %v1321, %v1327
    %1330 = vmatprep.subr.mxu0 0.0
    %1331 = vmatpush1.msra.mxu0 %v63
    %1332 = vmatprep.subr.mxu0 0.0
    %1333 = vmatpush1.msra.mxu0 %v62
    %1334 = vmatprep.subr.mxu0 0.0
    %1335 = vmatpush1.msra.mxu0 %v61
    %1336 = vmatprep.subr.mxu0 0.0
    %1337 = vmatpush1.msra.mxu0 %v60
    %1338 = vmatprep.subr.mxu0 0.0
    %1339 = vmatpush1.msra.mxu0 %v59
    %1340 = vmatprep.subr.mxu0 0.0
    %1341 = vmatpush1.msra.mxu0 %v58
    %1342 = vmatprep.subr.mxu0 0.0
    %1343 = vmatpush1.msra.mxu0 %v57
    %1344 = vmatprep.subr.mxu0 0.0
    %1345 = vmatpush1.msra.mxu0 %v56
    %1346 = vmatprep.subr.mxu0 0.0
    %1347 = vmatpush1.msra.mxu0 %v55
    %1348 = vmatprep.subr.mxu0 0.0
    %1349 = vmatpush1.msra.mxu0 %v54
    %1350 = vmatprep.subr.mxu0 0.0
    %1351 = vmatpush1.msra.mxu0 %v53
    %1352 = vmatprep.subr.mxu0 0.0
    %1353 = vmatpush1.msra.mxu0 %v52
    %1354 = vmatprep.subr.mxu0 0.0
    %1355 = vmatpush1.msra.mxu0 %v51
    %1356 = vmatprep.subr.mxu0 0.0
    %1357 = vmatpush1.msra.mxu0 %v50
    %1358 = vmatprep.subr.mxu0 0.0
    %1359 = vmatpush1.msra.mxu0 %v49
    %1360 = vmatprep.subr.mxu0 0.0
    %1361 = vmatpush1.msra.mxu0 %v48
    %1362 = vmatprep.subr.mxu0 0.0
    %1363 = vmatpush2.msra.mxu0 0.0
    %1364 = vmatprep.subr.mxu0 0.0
    %1365 = vmatpush2.msra.mxu0 0.0
    %1366 = vmatprep.subr.mxu0 0.0
    %1367 = vmatpush2.msra.mxu0 0.0
    %1368 = vmatprep.subr.mxu0 0.0
    %1369 = vmatpush2.msra.mxu0 0.0
    %1370 = vmatprep.subr.mxu0 0.0
    %1371 = vmatpush2.msra.mxu0 0.0
    %1372 = vmatprep.subr.mxu0 0.0
    %1373 = vmatpush2.msra.mxu0 0.0
    %1374 = vmatprep.subr.mxu0 0.0
    %1375 = vmatpush2.msra.mxu0 0.0
    %1376 = vmatprep.subr.mxu0 0.0
    %1377 = vmatpush2.msra.mxu0 0.0
    %1378 = vmatprep.subr.mxu0 0.0
    %1379 = vmatpush2.msra.mxu0 0.0
    %1380 = vmatprep.subr.mxu0 0.0
    %1381 = vmatpush2.msra.mxu0 0.0
    %1382 = vmatprep.subr.mxu0 0.0
    %1383 = vmatpush2.msra.mxu0 0.0
    %1384 = vmatprep.subr.mxu0 0.0
    %1385 = vmatpush2.msra.mxu0 0.0
    %1386 = vmatprep.subr.mxu0 0.0
    %1387 = vmatpush2.msra.mxu0 0.0
    %1388 = vmatprep.subr.mxu0 0.0
    %1389 = vmatpush2.msra.mxu0 0.0
    %1390 = vmatprep.subr.mxu0 0.0
    %1391 = vmatpush2.msra.mxu0 0.0
    %1392 = vmatprep.subr.mxu0 0.0
    %1393 = vmatpush2.msra.mxu0 0.0
    %1394 = vmatprep.mubr.f32.mxu0 0.0
    %1395 = vmatmul.mubr.f32.gmra.mxu0 %v1328
    %v1396 = vpop.f32.mrf.mxu0
    %v1397 = vadd.f32 %v404, %v1396
    %v1398 = vpop.f32.mrf.mxu0
    %1399 = vmatprep.mubr.f32.mxu0 0.0
    %1400 = vmatmul.mubr.f32.gmra.mxu0 %v1329
    %v1401 = vpop.f32.mrf.mxu0
    %v1402 = vadd.f32 %v404, %v1401
    %v1403 = vpop.f32.mrf.mxu0
    %1404 = vdwg.mxu0
    %v1405 = vmul.f32 %v1397, 1.442695
    %v1406 = vpow.pop %v1405
    %v1407 = vmul.f32 %v1402, 1.442695
    %v1408 = vpow.pop %v1407
    %v1409 = vsub.f32 1.0, %v1194
    %v1410 = vsub.f32 1.0, %v1195
    %v1411 = vsub.f32 1.0, %v1202
    %v1412 = vsub.f32 1.0, %v1203
    %v1413 = vmul.f32 %v1409, %v1411
    %v1414 = vmul.f32 %v1410, %v1412
    %v1415 = vmul.f32 %v1413, %v1406
    %v1416 = vmul.f32 %v1414, %v1408
    %vm1417 = vcmp.gt.f32.partialorder %v1413, 0.0
    %vm1418 = vcmp.gt.f32.partialorder %v1414, 0.0
    %s1419 = scalar_lea.vmem %s6, 48
    %v1420 = vld [vmem:[%s1419] sm:$0xff]
    %v1421 = vld [vmem:[%s1419 + $0x8] sm:$0xff]
    %v1422 = vadd.f32 %v1397, %v1420
    %v1423 = vadd.f32 %v1402, %v1421
    %v1424 = vsel %vm1417, %v1422, -inf
    %v1425 = vsel %vm1418, %v1423, -inf
    %v1426 = vsel %vm489, %v1415, 0.0
    %1427 = vadd.xlane.f32.xlu0 %v1426
    %v1428 = vpop.xlane.xlu0 %1427
    %v1429 = vsel %vm489, %v1416, 0.0
    %1430 = vadd.xlane.f32.xlu0 %v1429
    %v1431 = vpop.xlane.xlu0 %1430
    %v1432 = vrcp.pop %v1428
    %v1433 = vrcp.pop %v1431
    %v1434 = vmul.f32 %v1415, %v1432
    %v1435 = vmul.f32 %v1416, %v1433
    %v1436 = vmul.f32 %v1140, %v1434
    %v1437 = vmul.f32 %v1141, %v1435
    %v1438 = vadd.f32 %v1136, %v1436
    %v1439 = vadd.f32 %v1137, %v1437
    %v1440 = vsub.f32 1.0, %v1434
    %v1441 = vsub.f32 1.0, %v1435
    %v1442 = vmul.f32 %v1140, %v1440
    %v1443 = vmul.f32 %v1141, %v1441
    %vm1446 = vcmp.lt.s32.totalorder %v1424, 0
    %vm1447 = vcmp.lt.s32.totalorder %v1425, 0
    %v1448 = vxor.u32 %v1424, 2147483647
    %v1449 = vxor.u32 %v1425, 2147483647
    %v1450 = vsel %vm1446, %v1448, %v1424
    %v1451 = vsel %vm1447, %v1449, %v1425
    %v1452 = vand.u32 %v1450, 4294967264
    %v1453 = vand.u32 %v1451, 4294967264
    %v1454 = vor.u32 %v1452, %v367
    %v1455 = vor.u32 %v1453, %v367
    %v1456 = vsel %vm489, %v1454, 2147483648
    %v1457 = vand.u32 %v1456, 65535
    %v1458 = vshra.s32 %v1456, 16
    %v1459 = vcvt.s32.f32 %v1457
    %v1460 = vcvt.s32.f32 %v1458
    %1461 = vmax.xlane.f32.xlu0 %v1460
    %v1462 = vpop.xlane.xlu0 %1461
    %vm1463 = vcmp.eq.f32.partialorder %v1460, %v1462
    %v1464 = vsel %vm1463, %v1459, -inf
    %1465 = vmax.xlane.f32.xlu0 %v1464
    %v1466 = vpop.xlane.xlu0 %1465
    %v1467 = vcvt.f32.s32 %v1466
    %v1468 = vcvt.f32.s32 %v1462
    %v1469 = vshll.u32 %v1468, 16
    %v1470 = vadd.s32 %v1469, %v1467
    %v1471 = vsel %vm489, %v1455, 2147483648
    %v1472 = vand.u32 %v1471, 65535
    %v1473 = vshra.s32 %v1471, 16
    %v1474 = vcvt.s32.f32 %v1472
    %v1475 = vcvt.s32.f32 %v1473
    %1476 = vmax.xlane.f32.xlu0 %v1475
    %v1477 = vpop.xlane.xlu0 %1476
    %vm1478 = vcmp.eq.f32.partialorder %v1475, %v1477
    %v1479 = vsel %vm1478, %v1474, -inf
    %1480 = vmax.xlane.f32.xlu0 %v1479
    %v1481 = vpop.xlane.xlu0 %1480
    %v1482 = vcvt.f32.s32 %v1481
    %v1483 = vcvt.f32.s32 %v1477
    %v1484 = vshll.u32 %v1483, 16
    %v1485 = vadd.s32 %v1484, %v1482
    %v1486 = vand.u32 %v1470, 31
    %v1487 = vand.u32 %v1485, 31
    %v1488 = vsub.s32 23, %v1486
    %v1489 = vsub.s32 23, %v1487
    %vm1490 = vcmp.eq.s32.totalorder %v362, %v1488
    %vm1491 = vcmp.eq.s32.totalorder %v362, %v1489
    %v1492 = vsel %vm1490, 1, 0
    %v1493 = vsel %vm1491, 1, 0
    %v1494 = vcvt.s32.f32 %v1492
    %v1495 = vcvt.s32.f32 %v1493
    %v1496 = vadd.f32 %v1194, %v1494
    %v1497 = vadd.f32 %v1195, %v1495
    %vm1498 = vcmp.eq.s32.totalorder %v366, %v1488
    %vm1499 = vcmp.eq.s32.totalorder %v366, %v1489
    %v1500 = vsel %vm1498, 1, 0
    %v1501 = vsel %vm1499, 1, 0
    %v1502 = vcvt.s32.f32 %v1500
    %v1503 = vcvt.s32.f32 %v1501
    %v1504 = vadd.f32 %v1202, %v1502
    %v1505 = vadd.f32 %v1203, %v1503
    %v1506 = vpack.c.bf16 %v1497, %v1496
    %v1508 = vsel %vm489, %v1506, 0
    %1510 = vmatprep.subr.bf16.mxu0 0
    %1511 = vmatpush1.bf16.msra.mxu0 0
    %1512 = vmatprep.subr.bf16.mxu0 0
    %1513 = vmatpush1.bf16.msra.mxu0 0
    %1514 = vmatprep.subr.bf16.mxu0 0
    %1515 = vmatpush1.bf16.msra.mxu0 0
    %1516 = vmatprep.subr.bf16.mxu0 0
    %1517 = vmatpush1.bf16.msra.mxu0 0
    %1518 = vmatprep.subr.bf16.mxu0 0
    %1519 = vmatpush1.bf16.msra.mxu0 0
    %1520 = vmatprep.subr.bf16.mxu0 0
    %1521 = vmatpush1.bf16.msra.mxu0 0
    %1522 = vmatprep.subr.bf16.mxu0 %v599
    %1523 = vmatpush1.bf16.msra.mxu0 %v596
    %1524 = vmatprep.subr.bf16.mxu0 %v583
    %1525 = vmatpush1.bf16.msra.mxu0 %v582
    %1526 = vmatprep.subr.bf16.mxu0 0
    %1527 = vmatpush2.bf16.msra.mxu0 0
    %1528 = vmatprep.subr.bf16.mxu0 0
    %1529 = vmatpush2.bf16.msra.mxu0 0
    %1530 = vmatprep.subr.bf16.mxu0 0
    %1531 = vmatpush2.bf16.msra.mxu0 0
    %1532 = vmatprep.subr.bf16.mxu0 0
    %1533 = vmatpush2.bf16.msra.mxu0 0
    %1534 = vmatprep.subr.bf16.mxu0 0
    %1535 = vmatpush2.bf16.msra.mxu0 0
    %1536 = vmatprep.subr.bf16.mxu0 0
    %1537 = vmatpush2.bf16.msra.mxu0 0
    %1538 = vmatprep.subr.bf16.mxu0 0
    %1539 = vmatpush2.bf16.msra.mxu0 0
    %1540 = vmatprep.subr.bf16.mxu0 0
    %1541 = vmatpush2.bf16.msra.mxu0 0
    %1542 = vmatprep.mubr.bf16.mxu0 0
    %1543 = vmatmul.mubr.bf16.gmra.mxu0 %v1508
    %v1544 = vpop.f32.mrf.mxu0
    %v1545 = vadd.f32 0.0, %v1544
    %v1546 = vpop.f32.mrf.mxu0
    %v1547 = vadd.f32 0.0, %v1546
    %v1548 = vpop.f32.mrf.mxu0
    %v1549 = vadd.f32 0.0, %v1548
    %v1550 = vpop.f32.mrf.mxu0
    %v1551 = vadd.f32 0.0, %v1550
    %1552 = vdwg.mxu0
    %1553 = vmatprep.subr.bf16.mxu0 0
    %1554 = vmatpush1.bf16.msra.mxu0 0
    %1555 = vmatprep.subr.bf16.mxu0 0
    %1556 = vmatpush1.bf16.msra.mxu0 0
    %1557 = vmatprep.subr.bf16.mxu0 0
    %1558 = vmatpush1.bf16.msra.mxu0 0
    %1559 = vmatprep.subr.bf16.mxu0 0
    %1560 = vmatpush1.bf16.msra.mxu0 0
    %1561 = vmatprep.subr.bf16.mxu0 0
    %1562 = vmatpush1.bf16.msra.mxu0 0
    %1563 = vmatprep.subr.bf16.mxu0 0
    %1564 = vmatpush1.bf16.msra.mxu0 0
    %1565 = vmatprep.subr.bf16.mxu0 0
    %1566 = vmatpush1.bf16.msra.mxu0 %v602
    %1567 = vmatprep.subr.bf16.mxu0 0
    %1568 = vmatpush1.bf16.msra.mxu0 %v584
    %1569 = vmatprep.subr.bf16.mxu0 0
    %1570 = vmatpush2.bf16.msra.mxu0 0
    %1571 = vmatprep.subr.bf16.mxu0 0
    %1572 = vmatpush2.bf16.msra.mxu0 0
    %1573 = vmatprep.subr.bf16.mxu0 0
    %1574 = vmatpush2.bf16.msra.mxu0 0
    %1575 = vmatprep.subr.bf16.mxu0 0
    %1576 = vmatpush2.bf16.msra.mxu0 0
    %1577 = vmatprep.subr.bf16.mxu0 0
    %1578 = vmatpush2.bf16.msra.mxu0 0
    %1579 = vmatprep.subr.bf16.mxu0 0
    %1580 = vmatpush2.bf16.msra.mxu0 0
    %1581 = vmatprep.subr.bf16.mxu0 0
    %1582 = vmatpush2.bf16.msra.mxu0 0
    %1583 = vmatprep.subr.bf16.mxu0 0
    %1584 = vmatpush2.bf16.msra.mxu0 0
    %1585 = vmatprep.mubr.bf16.mxu0 0
    %1586 = vmatmul.mubr.bf16.gmra.mxu0 %v1508
    %v1587 = vpop.f32.mrf.mxu0
    %v1588 = vadd.f32 0.0, %v1587
    %v1589 = vpop.f32.mrf.mxu0
    %v1590 = vpop.f32.mrf.mxu0
    %v1591 = vadd.f32 0.0, %v1590
    %v1592 = vpop.f32.mrf.mxu0
    %1593 = vdwg.mxu0
    %v1594 = vadd.f32 %v312, %v1545
    %v1595 = vadd.f32 %v314, %v1547
    %v1596 = vadd.f32 %v355, %v1588
    %v1597 = vadd.f32 %v316, %v1549
    %v1598 = vadd.f32 %v318, %v1551
    %v1599 = vadd.f32 %v358, %v1591
    %v1600 = vxor.u32 %v1594, 2147483648
    %v1601 = vxor.u32 %v1595, 2147483648
    %v1602 = vxor.u32 %v1597, 2147483648
    %v1603 = vxor.u32 %v1598, 2147483648
    %v1604 = vmul.f32 %v1600, 1.442695
    %v1605 = vpow.pop %v1604
    %v1606 = vmul.f32 %v1601, 1.442695
    %v1607 = vpow.pop %v1606
    %v1608 = vmul.f32 %v1602, 1.442695
    %v1609 = vpow.pop %v1608
    %v1610 = vmul.f32 %v1603, 1.442695
    %v1611 = vpow.pop %v1610
    %v1612 = vadd.f32 %v1605, 1.0
    %v1613 = vadd.f32 %v1607, 1.0
    %v1614 = vadd.f32 %v1609, 1.0
    %v1615 = vadd.f32 %v1611, 1.0
    %v1616 = vrcp.pop %v1612
    %v1617 = vmul.f32 1.0, %v1616
    %v1618 = vrcp.pop %v1613
    %v1619 = vmul.f32 1.0, %v1618
    %v1620 = vrcp.pop %v1614
    %v1621 = vmul.f32 1.0, %v1620
    %v1622 = vrcp.pop %v1615
    %v1623 = vmul.f32 1.0, %v1622
    %v1624 = vtanh.pop %v1596
    %v1625 = vtanh.pop %v1599
    %v1626 = vmul.f32 %v1617, %v1624
    %v1627 = vmul.f32 %v1621, %v1625
    %v1628 = vtanh.pop %v1626
    %v1629 = vtanh.pop %v1627
    %v1630 = vmul.f32 %v1619, %v1628
    %v1631 = vmul.f32 %v1623, %v1629
    %1632 = vmatprep.subr.mxu0 0.0
    %1633 = vmatpush1.msra.mxu0 %v63
    %1634 = vmatprep.subr.mxu0 0.0
    %1635 = vmatpush1.msra.mxu0 %v62
    %1636 = vmatprep.subr.mxu0 0.0
    %1637 = vmatpush1.msra.mxu0 %v61
    %1638 = vmatprep.subr.mxu0 0.0
    %1639 = vmatpush1.msra.mxu0 %v60
    %1640 = vmatprep.subr.mxu0 0.0
    %1641 = vmatpush1.msra.mxu0 %v59
    %1642 = vmatprep.subr.mxu0 0.0
    %1643 = vmatpush1.msra.mxu0 %v58
    %1644 = vmatprep.subr.mxu0 0.0
    %1645 = vmatpush1.msra.mxu0 %v57
    %1646 = vmatprep.subr.mxu0 0.0
    %1647 = vmatpush1.msra.mxu0 %v56
    %1648 = vmatprep.subr.mxu0 0.0
    %1649 = vmatpush1.msra.mxu0 %v55
    %1650 = vmatprep.subr.mxu0 0.0
    %1651 = vmatpush1.msra.mxu0 %v54
    %1652 = vmatprep.subr.mxu0 0.0
    %1653 = vmatpush1.msra.mxu0 %v53
    %1654 = vmatprep.subr.mxu0 0.0
    %1655 = vmatpush1.msra.mxu0 %v52
    %1656 = vmatprep.subr.mxu0 0.0
    %1657 = vmatpush1.msra.mxu0 %v51
    %1658 = vmatprep.subr.mxu0 0.0
    %1659 = vmatpush1.msra.mxu0 %v50
    %1660 = vmatprep.subr.mxu0 0.0
    %1661 = vmatpush1.msra.mxu0 %v49
    %1662 = vmatprep.subr.mxu0 0.0
    %1663 = vmatpush1.msra.mxu0 %v48
    %1664 = vmatprep.subr.mxu0 0.0
    %1665 = vmatpush2.msra.mxu0 0.0
    %1666 = vmatprep.subr.mxu0 0.0
    %1667 = vmatpush2.msra.mxu0 0.0
    %1668 = vmatprep.subr.mxu0 0.0
    %1669 = vmatpush2.msra.mxu0 0.0
    %1670 = vmatprep.subr.mxu0 0.0
    %1671 = vmatpush2.msra.mxu0 0.0
    %1672 = vmatprep.subr.mxu0 0.0
    %1673 = vmatpush2.msra.mxu0 0.0
    %1674 = vmatprep.subr.mxu0 0.0
    %1675 = vmatpush2.msra.mxu0 0.0
    %1676 = vmatprep.subr.mxu0 0.0
    %1677 = vmatpush2.msra.mxu0 0.0
    %1678 = vmatprep.subr.mxu0 0.0
    %1679 = vmatpush2.msra.mxu0 0.0
    %1680 = vmatprep.subr.mxu0 0.0
    %1681 = vmatpush2.msra.mxu0 0.0
    %1682 = vmatprep.subr.mxu0 0.0
    %1683 = vmatpush2.msra.mxu0 0.0
    %1684 = vmatprep.subr.mxu0 0.0
    %1685 = vmatpush2.msra.mxu0 0.0
    %1686 = vmatprep.subr.mxu0 0.0
    %1687 = vmatpush2.msra.mxu0 0.0
    %1688 = vmatprep.subr.mxu0 0.0
    %1689 = vmatpush2.msra.mxu0 0.0
    %1690 = vmatprep.subr.mxu0 0.0
    %1691 = vmatpush2.msra.mxu0 0.0
    %1692 = vmatprep.subr.mxu0 0.0
    %1693 = vmatpush2.msra.mxu0 0.0
    %1694 = vmatprep.subr.mxu0 0.0
    %1695 = vmatpush2.msra.mxu0 0.0
    %1696 = vmatprep.mubr.f32.mxu0 0.0
    %1697 = vmatmul.mubr.f32.gmra.mxu0 %v1630
    %v1698 = vpop.f32.mrf.mxu0
    %v1699 = vadd.f32 %v404, %v1698
    %v1700 = vpop.f32.mrf.mxu0
    %1701 = vmatprep.mubr.f32.mxu0 0.0
    %1702 = vmatmul.mubr.f32.gmra.mxu0 %v1631
    %v1703 = vpop.f32.mrf.mxu0
    %v1704 = vadd.f32 %v404, %v1703
    %v1705 = vpop.f32.mrf.mxu0
    %1706 = vdwg.mxu0
    %v1707 = vmul.f32 %v1699, 1.442695
    %v1708 = vpow.pop %v1707
    %v1709 = vmul.f32 %v1704, 1.442695
    %v1710 = vpow.pop %v1709
    %v1711 = vsub.f32 1.0, %v1496
    %v1712 = vsub.f32 1.0, %v1497
    %v1713 = vsub.f32 1.0, %v1504
    %v1714 = vsub.f32 1.0, %v1505
    %v1715 = vmul.f32 %v1711, %v1713
    %v1716 = vmul.f32 %v1712, %v1714
    %v1717 = vmul.f32 %v1715, %v1708
    %v1718 = vmul.f32 %v1716, %v1710
    %vm1719 = vcmp.gt.f32.partialorder %v1715, 0.0
    %vm1720 = vcmp.gt.f32.partialorder %v1716, 0.0
    %s1721 = scalar_lea.vmem %s6, 64
    %v1722 = vld [vmem:[%s1721] sm:$0xff]
    %v1723 = vld [vmem:[%s1721 + $0x8] sm:$0xff]
    %v1724 = vadd.f32 %v1699, %v1722
    %v1725 = vadd.f32 %v1704, %v1723
    %v1726 = vsel %vm1719, %v1724, -inf
    %v1727 = vsel %vm1720, %v1725, -inf
    %v1728 = vsel %vm489, %v1717, 0.0
    %1729 = vadd.xlane.f32.xlu0 %v1728
    %v1730 = vpop.xlane.xlu0 %1729
    %v1731 = vsel %vm489, %v1718, 0.0
    %1732 = vadd.xlane.f32.xlu0 %v1731
    %v1733 = vpop.xlane.xlu0 %1732
    %v1734 = vrcp.pop %v1730
    %v1735 = vrcp.pop %v1733
    %v1736 = vmul.f32 %v1717, %v1734
    %v1737 = vmul.f32 %v1718, %v1735
    %v1738 = vmul.f32 %v1442, %v1736
    %v1739 = vmul.f32 %v1443, %v1737
    %v1740 = vadd.f32 %v1438, %v1738
    %v1741 = vadd.f32 %v1439, %v1739
    %vm1744 = vcmp.lt.s32.totalorder %v1726, 0
    %vm1745 = vcmp.lt.s32.totalorder %v1727, 0
    %v1746 = vxor.u32 %v1726, 2147483647
    %v1747 = vxor.u32 %v1727, 2147483647
    %v1748 = vsel %vm1744, %v1746, %v1726
    %v1749 = vsel %vm1745, %v1747, %v1727
    %v1750 = vand.u32 %v1748, 4294967264
    %v1751 = vand.u32 %v1749, 4294967264
    %v1752 = vor.u32 %v1750, %v367
    %v1753 = vor.u32 %v1751, %v367
    %v1754 = vsel %vm489, %v1752, 2147483648
    %v1755 = vand.u32 %v1754, 65535
    %v1756 = vshra.s32 %v1754, 16
    %v1757 = vcvt.s32.f32 %v1755
    %v1758 = vcvt.s32.f32 %v1756
    %1759 = vmax.xlane.f32.xlu0 %v1758
    %v1760 = vpop.xlane.xlu0 %1759
    %vm1761 = vcmp.eq.f32.partialorder %v1758, %v1760
    %v1762 = vsel %vm1761, %v1757, -inf
    %1763 = vmax.xlane.f32.xlu0 %v1762
    %v1764 = vpop.xlane.xlu0 %1763
    %v1765 = vcvt.f32.s32 %v1764
    %v1766 = vcvt.f32.s32 %v1760
    %v1767 = vshll.u32 %v1766, 16
    %v1768 = vadd.s32 %v1767, %v1765
    %v1769 = vsel %vm489, %v1753, 2147483648
    %v1770 = vand.u32 %v1769, 65535
    %v1771 = vshra.s32 %v1769, 16
    %v1772 = vcvt.s32.f32 %v1770
    %v1773 = vcvt.s32.f32 %v1771
    %1774 = vmax.xlane.f32.xlu0 %v1773
    %v1775 = vpop.xlane.xlu0 %1774
    %vm1776 = vcmp.eq.f32.partialorder %v1773, %v1775
    %v1777 = vsel %vm1776, %v1772, -inf
    %1778 = vmax.xlane.f32.xlu0 %v1777
    %v1779 = vpop.xlane.xlu0 %1778
    %v1780 = vcvt.f32.s32 %v1779
    %v1781 = vcvt.f32.s32 %v1775
    %v1782 = vshll.u32 %v1781, 16
    %v1783 = vadd.s32 %v1782, %v1780
    %v1784 = vand.u32 %v1768, 31
    %v1785 = vand.u32 %v1783, 31
    %v1786 = vsub.s32 23, %v1784
    %v1787 = vsub.s32 23, %v1785
    %vm1788 = vcmp.eq.s32.totalorder %v362, %v1786
    %vm1789 = vcmp.eq.s32.totalorder %v362, %v1787
    %v1790 = vsel %vm1788, 1, 0
    %v1791 = vsel %vm1789, 1, 0
    %v1792 = vcvt.s32.f32 %v1790
    %v1793 = vcvt.s32.f32 %v1791
    %v1794 = vadd.f32 %v1496, %v1792
    %v1795 = vadd.f32 %v1497, %v1793
    %1798 = vrot.lane.b32.xlu0 %v1740, 24
    %v1799 = vpop.permute.xlu0 %1798
    %1800 = vrot.lane.b32.xlu0 %v1741, 24
    %v1801 = vpop.permute.xlu0 %1800
    %v1804 = vsel %vm489, %v1794, %v1799
    %v1805 = vsel %vm489, %v1795, %v1801
    %vm1806 = vcmask 392192
    %1807 = vst.msk [vmem:[#allocation5] sm:$0xff] %vm1806, %v1804
    %1808 = vst.msk [vmem:[#allocation5 + $0x8] sm:$0xff] %vm1806, %v1805
    // Predicated region
    $region34: #{tpu_custom_call.1} parent=1 // pred_check
      _
    $region35: #{tpu_custom_call.1} parent=1 // pred_check_branch
      %1810 = sbr.rel (0) target = $region37
    $region36: #{tpu_custom_call.1} parent=1 // pred_region
      %s1812 = ssub.s32 256, 256
      %1813 = vsyncadd [#allocation4], %s1812
      %s1814 = sshll.u32 [#allocation5], 4
      %s1815 = int_to_ptr.vmem [resolvable:$true] %s1814
      %1820 = dma.vmem_to_hbm [thread:$0]  %s1815, 256, %s7, [#allocation4], 128, 128, 8
    $region37: #{tpu_custom_call.1} parent=1 // pred_fallthru
      _
    // Predicated region
    $region38: #{tpu_custom_call.1} parent=1 // pred_check
      _
    $region39: #{tpu_custom_call.1} parent=1 // pred_check_branch
      %1822 = sbr.rel (0) target = $region41
    $region40: #{tpu_custom_call.1} parent=1 // pred_region
      %1823 = dma.done [#allocation4], 256
    $region41: #{tpu_custom_call.1} parent=1 // pred_fallthru
      _
    %1824 = vsyncpa [#allocation3], 1
    %1825 = vsyncpa [#allocation4], 1

</llo_original>
